<compile_context>
chip_gen: v5e
topology: v5e:2x2
jax: 0.10.0
libtpu: 0.0.40
codegen_flags: <defaults>
</compile_context>

<pallas_src>
import functools

import jax
import jax.numpy as jnp
from jax.experimental import pallas as pl
from jax.experimental.pallas import tpu as pltpu


# ----------------------------------------------------------------------------
# Fused Pallas kernel: all `depth` layers for one batch tile
# ----------------------------------------------------------------------------
def transformer_kernel(x_ref, wqkv_ref, tqkv_ref, bias_ref, wo_ref, bo_ref,
                       w1_ref, b1_ref, w2_ref, b2_ref, o_ref,
                       *, depth, heads, dim_key, dim_value):
    bf, f32 = jnp.bfloat16, jnp.float32
    HK = heads * dim_key
    HV = heads * dim_value
    Bt, N, C = x_ref.shape
    dim_out = o_ref.shape[-1]

    # Fold the batch tile into the matmul M dimension.
    x = x_ref[...].reshape(Bt * N, C)                               # (Bt*N, C) f32

    def layer(d, x):
        # ---- Attention --------------------------------------------------
        # Fused QKV projection (BN affine + 1/sqrt(dk) scale pre-folded).
        qkv = jnp.dot(x.astype(bf), wqkv_ref[d],
                      preferred_element_type=f32) + tqkv_ref[d]     # (Bt*N, 2HK+HV)
        qkv = qkv.reshape(Bt, N, 2 * HK + HV)
        bias_d = bias_ref[d].astype(f32)                            # (heads, N, N)

        head_outs = []
        for h in range(heads):                                      # static unroll
            qh = qkv[:, :, h * dim_key:(h + 1) * dim_key].astype(bf)
            kh = qkv[:, :, HK + h * dim_key:HK + (h + 1) * dim_key].astype(bf)
            vh = qkv[:, :, 2 * HK + h * dim_value:
                           2 * HK + (h + 1) * dim_value].astype(bf)

            # scores: q @ k^T (scale folded into q) + positional bias
            dots = jnp.einsum('bqd,bkd->bqk', qh, kh,
                              preferred_element_type=f32)           # (Bt, N, N)
            dots = dots + bias_d[h]
            dots = dots - jnp.max(dots, axis=-1, keepdims=True)
            p = jnp.exp(dots)
            p = p * pl.reciprocal(jnp.sum(p, axis=-1, keepdims=True),
                                  approx=True)                      # softmax
            head_outs.append(jnp.einsum('bqk,bkd->bqd', p.astype(bf), vh,
                                        preferred_element_type=f32))

        # One GELU + one (Bt*N, HV) @ (HV, dim) out-projection for all heads.
        attn = jnp.concatenate(head_outs, axis=-1).reshape(Bt * N, HV)
        attn = jax.nn.gelu(attn, approximate=True)                  # tanh GELU (EUP)
        x = jnp.dot(attn.astype(bf), wo_ref[d],
                    preferred_element_type=f32) + bo_ref[d] + x     # attn residual

        # ---- FeedForward: 1x1 conv -> Hardswish -> 1x1 conv, + residual --
        h1 = jnp.dot(x.astype(bf), w1_ref[d],
                     preferred_element_type=f32) + b1_ref[d]
        h1 = h1 * jnp.clip(h1 + 3.0, 0.0, 6.0) * (1.0 / 6.0)        # Hardswish
        x = jnp.dot(h1.astype(bf), w2_ref[d],
                    preferred_element_type=f32) + b2_ref[d] + x     # ff residual
        return x

    x = jax.lax.fori_loop(0, depth, layer, x)
    o_ref[...] = x.reshape(Bt, N, dim_out)


# ----------------------------------------------------------------------------
# pallas_call wrapper
# ----------------------------------------------------------------------------
def transformer_forward(x_nchw, params, *, depth, heads, dim_key, dim_value,
                        batch_tiles=None):
    B, C, H, W = x_nchw.shape
    N = H * W
    x = jnp.transpose(x_nchw, (0, 2, 3, 1)).reshape(B, N, C)
    dim_out = params['wo'].shape[2]

    # >=2 grid steps keeps both v7x TensorCores busy; v5e/v6e pay ~0.35us/step.
    if batch_tiles is None:
        batch_tiles = 2 if (B >= 2 and B % 2 == 0) else 1
    assert B % batch_tiles == 0
    Bt = B // batch_tiles

    operand_names = ('wqkv', 'tqkv', 'bias', 'wo', 'bo', 'w1', 'b1', 'w2', 'b2')
    operands = [params[k] for k in operand_names]

    # Weight/bias blocks are grid-invariant (constant index_map) -> VMEM
    # resident across steps.  TODO(synk): at real LeViT sizes single-buffer
    # these (pipeline_mode=pl.Buffered(1)) or move depth onto an "arbitrary"
    # grid axis and raise vmem_limit_bytes (v5e scoped default 16 MiB, v7x
    # physical 64 MiB); irrelevant at the ~100 KB footprint here.
    def full_spec(arr):
        nd = arr.ndim
        return pl.BlockSpec(arr.shape, lambda b, _nd=nd: (0,) * _nd)

    kern = functools.partial(transformer_kernel, depth=depth, heads=heads,
                             dim_key=dim_key, dim_value=dim_value)
    out = pl.pallas_call(
        kern,
        out_shape=jax.ShapeDtypeStruct((B, N, dim_out), jnp.float32),
        grid=(batch_tiles,),
        in_specs=[pl.BlockSpec((Bt, N, C), lambda b: (b, 0, 0))]
                 + [full_spec(op) for op in operands],
        out_specs=pl.BlockSpec((Bt, N, dim_out), lambda b: (b, 0, 0)),
        compiler_params=pltpu.CompilerParams(
            dimension_semantics=("parallel",)),
    )(x, *operands)
    return jnp.transpose(out.reshape(B, H, W, dim_out), (0, 3, 1, 2))


# ----------------------------------------------------------------------------
# Deterministic parameter init: fold eval-mode BN (generic running stats) and
# the softmax scale into the weights, stack layers along a leading depth axis.
# ----------------------------------------------------------------------------
def init_params(key, *, depth, dim, fmap_size, heads, dim_key, dim_value,
                mlp_mult):
    HK, HV = heads * dim_key, heads * dim_value
    N = fmap_size * fmap_size
    hid = dim * mlp_mult
    scale = dim_key ** -0.5
    eps = 1e-5

    # relative-position index table (downsample=False), shared geometry
    r = jnp.arange(fmap_size)
    pos = jnp.stack(jnp.meshgrid(r, r, indexing='ij'), axis=-1).reshape(-1, 2)
    rel = jnp.abs(pos[:, None, :] - pos[None, :, :])
    pos_idx = rel[..., 0] * fmap_size + rel[..., 1]                 # (N, N)

    def nrm(k, shape, s):
        return jax.random.normal(k, shape, dtype=jnp.float32) * s

    def bn(kk, c):
        # eval-mode BN with generic running stats:
        #   y = (x - mean) * g / sqrt(var + eps) + b  ==  x * s + t
        kg, kb, km, kv = jax.random.split(kk, 4)
        g = 1.0 + nrm(kg, (1, c), 0.1)
        b = nrm(kb, (1, c), 0.1)
        mean = nrm(km, (1, c), 0.1)
        var = 1.0 + jnp.abs(nrm(kv, (1, c), 0.1))
        s = g / jnp.sqrt(var + eps)
        return s, b - mean * s

    layers = {k: [] for k in ('wqkv', 'tqkv', 'bias', 'wo', 'bo',
                              'w1', 'b1', 'w2', 'b2')}
    for lk in jax.random.split(key, depth):
        ks = jax.random.split(lk, 14)
        wq, wk, wv = (nrm(ks[0], (dim, HK), 0.05), nrm(ks[1], (dim, HK), 0.05),
                      nrm(ks[2], (dim, HV), 0.05))
        sq, tq = bn(ks[3], HK)
        sk, tk = bn(ks[4], HK)
        sv, tv = bn(ks[5], HV)
        wo, bo = nrm(ks[6], (HV, dim), 0.05), nrm(ks[7], (1, dim), 0.05)
        # NOTE: PyTorch zero-inits this BN's gamma; we use a generic non-zero
        # gamma so the correctness check exercises the attention path (the
        # kernel handles any gamma, including 0, identically).
        so, to = bn(ks[8], dim)
        emb = nrm(ks[9], (N, heads), 0.2)
        # Positional bias exactly as the module's apply_pos_bias: added as
        # (emb / scale) on top of dots that already carry the *scale factor.
        bias = jnp.transpose(emb[pos_idx], (2, 0, 1)) / scale       # (heads, N, N)
        w1, b1 = nrm(ks[10], (dim, hid), 0.05), nrm(ks[11], (1, hid), 0.05)
        w2, b2 = nrm(ks[12], (hid, dim), 0.05), nrm(ks[13], (1, dim), 0.05)

        # --- fold BN affine (and softmax scale into the Q branch) ----------
        wqkv = jnp.concatenate([wq * sq * scale, wk * sk, wv * sv], axis=1)
        tqkv = jnp.concatenate([tq * scale, tk, tv], axis=1)
        wo_f = wo * so
        bo_f = bo * so + to

        layers['wqkv'].append(wqkv.astype(jnp.bfloat16))
        layers['tqkv'].append(tqkv)
        layers['bias'].append(bias.astype(jnp.bfloat16))   # bf16 halves footprint
        layers['wo'].append(wo_f.astype(jnp.bfloat16))
        layers['bo'].append(bo_f)
        layers['w1'].append(w1.astype(jnp.bfloat16))
        layers['b1'].append(b1)
        layers['w2'].append(w2.astype(jnp.bfloat16))
        layers['b2'].append(b2)

    return {k: jnp.stack(v) for k, v in layers.items()}


# ----------------------------------------------------------------------------
# Pure-JAX reference mirroring the kernel's mixed precision (bf16 MXU inputs,
# f32 accumulation / elementwise, tanh GELU) for a tight correctness check.
# ----------------------------------------------------------------------------
def ref_forward(x_nchw, params, *, depth, heads, dim_key, dim_value):
    bf, f32 = jnp.bfloat16, jnp.float32
    B, C, H, W = x_nchw.shape
    N = H * W
    HK, HV = heads * dim_key, heads * dim_value
    x = jnp.transpose(x_nchw, (0, 2, 3, 1)).reshape(B, N, C)
    for d in range(depth):
        qkv = jnp.einsum('bnc,ck->bnk', x.astype(bf), params['wqkv'][d],
                         preferred_element_type=f32) + params['tqkv'][d]
        q, k, v = qkv[..., :HK], qkv[..., HK:2 * HK], qkv[..., 2 * HK:]
        sp = lambda t, dd: t.reshape(B, N, heads, dd).transpose(0, 2, 1, 3)
        qh, kh, vh = sp(q, dim_key), sp(k, dim_key), sp(v, dim_value)
        dots = jnp.einsum('bhid,bhjd->bhij', qh.astype(bf), kh.astype(bf),
                          preferred_element_type=f32) \
               + params['bias'][d][None].astype(f32)
        attn = jax.nn.softmax(dots, axis=-1)
        out = jnp.einsum('bhij,bhjd->bhid', attn.astype(bf), vh.astype(bf),
                         preferred_element_type=f32)
        out = out.transpose(0, 2, 1, 3).reshape(B, N, HV)
        out = jax.nn.gelu(out, approximate=True)
        y = jnp.einsum('bnv,vd->bnd', out.astype(bf), params['wo'][d],
                       preferred_element_type=f32) + params['bo'][d]
        x = y + x
        h1 = jnp.einsum('bnc,ch->bnh', x.astype(bf), params['w1'][d],
                        preferred_element_type=f32) + params['b1'][d]
        h1 = h1 * jnp.clip(h1 + 3.0, 0.0, 6.0) / 6.0
        x = jnp.einsum('bnh,hc->bnc', h1.astype(bf), params['w2'][d],
                       preferred_element_type=f32) + params['b2'][d] + x
    return jnp.transpose(x.reshape(B, H, W, -1), (0, 3, 1, 2))


# ----------------------------------------------------------------------------
if __name__ == "__main__":
    # Small config: dim=32, fmap_size=4, depth=2, heads=2, dim_key=16,
    # dim_value=16, mlp_mult=2, downsample=False (attn residual active).
    dim, fmap_size, depth = 32, 4, 2
    heads, dim_key, dim_value, mlp_mult = 2, 16, 16, 2
    B = 8                      # folded into 2 grid steps of Bt=4 (Bt*N=64 rows)

    key = jax.random.PRNGKey(0)
    kx, kp = jax.random.split(key)
    x = jax.random.normal(kx, (B, dim, fmap_size, fmap_size), dtype=jnp.float32)
    params = init_params(kp, depth=depth, dim=dim, fmap_size=fmap_size,
                         heads=heads, dim_key=dim_key, dim_value=dim_value,
                         mlp_mult=mlp_mult)

    fwd = jax.jit(functools.partial(transformer_forward, depth=depth,
                                    heads=heads, dim_key=dim_key,
                                    dim_value=dim_value))
    out = jax.block_until_ready(fwd(x, params))

    ref = ref_forward(x, params, depth=depth, heads=heads,
                      dim_key=dim_key, dim_value=dim_value)

    assert out.shape == (B, dim, fmap_size, fmap_size)
    # Remaining deltas vs the mirrored reference: approx softmax reciprocal +
    # f32 accumulation-order differences (both << tolerance).
    assert jnp.allclose(out, ref, atol=2e-2, rtol=2e-2), \
        "mismatch vs JAX reference"
    print("KERNEL_OK")
</pallas_src>

<mosaic_0001>
module attributes {stable_mosaic.version = 11 : i64} {
  func.func @transformer_kernel(%arg0: i32, %arg1: memref<4x16x32xf32, #tpu.memory_space<vmem>>, %arg2: memref<2x32x96xbf16, #tpu.memory_space<vmem>>, %arg3: memref<2x1x96xf32, #tpu.memory_space<vmem>>, %arg4: memref<2x2x16x16xbf16, #tpu.memory_space<vmem>>, %arg5: memref<2x32x32xbf16, #tpu.memory_space<vmem>>, %arg6: memref<2x1x32xf32, #tpu.memory_space<vmem>>, %arg7: memref<2x32x64xbf16, #tpu.memory_space<vmem>>, %arg8: memref<2x1x64xf32, #tpu.memory_space<vmem>>, %arg9: memref<2x64x32xbf16, #tpu.memory_space<vmem>>, %arg10: memref<2x1x32xf32, #tpu.memory_space<vmem>>, %arg11: memref<4x16x32xf32, #tpu.memory_space<vmem>>) attributes {dimension_semantics = [#tpu.dimension_semantics<parallel>], iteration_bounds = array<i64: 2>, scalar_prefetch = 0 : i64, scratch_operands = 0 : i64, tpu.core_type = #tpu.core_type<tc>, window_params = [{transform_indices = @transform_0, window_bounds = array<i64: 4, 16, 32>}, {pipeline_mode = #tpu.pipeline_mode<synchronous>, transform_indices = @transform_1, window_bounds = array<i64: 2, 32, 96>}, {pipeline_mode = #tpu.pipeline_mode<synchronous>, transform_indices = @transform_2, window_bounds = array<i64: 2, 1, 96>}, {pipeline_mode = #tpu.pipeline_mode<synchronous>, transform_indices = @transform_3, window_bounds = array<i64: 2, 2, 16, 16>}, {pipeline_mode = #tpu.pipeline_mode<synchronous>, transform_indices = @transform_4, window_bounds = array<i64: 2, 32, 32>}, {pipeline_mode = #tpu.pipeline_mode<synchronous>, transform_indices = @transform_5, window_bounds = array<i64: 2, 1, 32>}, {pipeline_mode = #tpu.pipeline_mode<synchronous>, transform_indices = @transform_6, window_bounds = array<i64: 2, 32, 64>}, {pipeline_mode = #tpu.pipeline_mode<synchronous>, transform_indices = @transform_7, window_bounds = array<i64: 2, 1, 64>}, {pipeline_mode = #tpu.pipeline_mode<synchronous>, transform_indices = @transform_8, window_bounds = array<i64: 2, 64, 32>}, {pipeline_mode = #tpu.pipeline_mode<synchronous>, transform_indices = @transform_9, window_bounds = array<i64: 2, 1, 32>}, {transform_indices = @transform_10, window_bounds = array<i64: 4, 16, 32>}]} {
    %c0 = arith.constant 0 : index
    %c0_0 = arith.constant 0 : index
    %c0_1 = arith.constant 0 : index
    %0 = vector.load %arg1[%c0, %c0_0, %c0_1] : memref<4x16x32xf32, #tpu.memory_space<vmem>>, vector<4x16x32xf32>
    %1 = vector.shape_cast %0 : vector<4x16x32xf32> to vector<64x32xf32>
    %c0_i32 = arith.constant 0 : i32
    %c2_i32 = arith.constant 2 : i32
    %2 = arith.addi %c0_i32, %c2_i32 : i32
    %c1_i32 = arith.constant 1 : i32
    %3 = scf.for %arg12 = %c0_i32 to %2 step %c1_i32 iter_args(%arg13 = %1) -> (vector<64x32xf32>)  : i32 {
      %6 = arith.truncf %arg13 : vector<64x32xf32> to vector<64x32xbf16>
      %7 = arith.index_cast %arg12 : i32 to index
      %c0_6 = arith.constant 0 : index
      %c0_7 = arith.constant 0 : index
      %8 = vector.load %arg2[%7, %c0_6, %c0_7] : memref<2x32x96xbf16, #tpu.memory_space<vmem>>, vector<1x32x96xbf16>
      %9 = vector.shape_cast %8 : vector<1x32x96xbf16> to vector<32x96xbf16>
      %cst = arith.constant dense<0.000000e+00> : vector<64x96xf32>
      %10 = tpu.matmul %6, %9, %cst {dimension_numbers = #tpu.dot_dimension_numbers<[1], [0], [0], [1], [0, 0, 1, 1], [], []>} : vector<64x32xbf16>, vector<32x96xbf16>, vector<64x96xf32> -> vector<64x96xf32>
      %11 = arith.index_cast %arg12 : i32 to index
      %c0_8 = arith.constant 0 : index
      %c0_9 = arith.constant 0 : index
      %12 = vector.load %arg3[%11, %c0_8, %c0_9] : memref<2x1x96xf32, #tpu.memory_space<vmem>>, vector<1x1x96xf32>
      %13 = vector.shape_cast %12 : vector<1x1x96xf32> to vector<1x96xf32>
      %14 = vector.broadcast %13 : vector<1x96xf32> to vector<64x96xf32>
      %15 = arith.addf %10, %14 : vector<64x96xf32>
      %16 = vector.shape_cast %15 : vector<64x96xf32> to vector<4x16x96xf32>
      %17 = arith.index_cast %arg12 : i32 to index
      %c0_10 = arith.constant 0 : index
      %c0_11 = arith.constant 0 : index
      %c0_12 = arith.constant 0 : index
      %18 = vector.load %arg4[%17, %c0_10, %c0_11, %c0_12] : memref<2x2x16x16xbf16, #tpu.memory_space<vmem>>, vector<1x2x16x16xbf16>
      %19 = vector.shape_cast %18 : vector<1x2x16x16xbf16> to vector<2x16x16xbf16>
      %20 = arith.extf %19 : vector<2x16x16xbf16> to vector<2x16x16xf32>
      %21 = vector.extract_strided_slice %16 {offsets = [0, 0, 0], sizes = [4, 16, 16], strides = [1, 1, 1]} : vector<4x16x96xf32> to vector<4x16x16xf32>
      %22 = arith.truncf %21 : vector<4x16x16xf32> to vector<4x16x16xbf16>
      %23 = vector.extract_strided_slice %16 {offsets = [0, 0, 32], sizes = [4, 16, 16], strides = [1, 1, 1]} : vector<4x16x96xf32> to vector<4x16x16xf32>
      %24 = arith.truncf %23 : vector<4x16x16xf32> to vector<4x16x16xbf16>
      %25 = vector.extract_strided_slice %16 {offsets = [0, 0, 64], sizes = [4, 16, 16], strides = [1, 1, 1]} : vector<4x16x96xf32> to vector<4x16x16xf32>
      %26 = arith.truncf %25 : vector<4x16x16xf32> to vector<4x16x16xbf16>
      "tpu.trace_start"() <{level = 10 : i32, message = "bqd,bkd->bqk"}> : () -> ()
      %cst_13 = arith.constant dense<0.000000e+00> : vector<4x16x16xf32>
      %27 = tpu.matmul %22, %24, %cst_13 {dimension_numbers = #tpu.dot_dimension_numbers<[2], [2], [1], [1], [0, 0, 0, 1, 1, 1], [0], [0]>} : vector<4x16x16xbf16>, vector<4x16x16xbf16>, vector<4x16x16xf32> -> vector<4x16x16xf32>
      "tpu.trace_stop"() : () -> ()
      %28 = vector.extract_strided_slice %20 {offsets = [0, 0, 0], sizes = [1, 16, 16], strides = [1, 1, 1]} : vector<2x16x16xf32> to vector<1x16x16xf32>
      %29 = vector.shape_cast %28 : vector<1x16x16xf32> to vector<16x16xf32>
      %30 = vector.shape_cast %29 : vector<16x16xf32> to vector<1x16x16xf32>
      %31 = vector.broadcast %30 : vector<1x16x16xf32> to vector<4x16x16xf32>
      %32 = arith.addf %27, %31 : vector<4x16x16xf32>
      %cst_14 = arith.constant dense<0xFF800000> : vector<4x16xf32>
      %33 = vector.multi_reduction <maximumf>, %32, %cst_14 [2] : vector<4x16x16xf32> to vector<4x16xf32>
      %34 = vector.shape_cast %33 : vector<4x16xf32> to vector<4x16x1xf32>
      %35 = vector.broadcast %34 : vector<4x16x1xf32> to vector<4x16x16xf32>
      %36 = arith.subf %32, %35 : vector<4x16x16xf32>
      %37 = math.exp %36 : vector<4x16x16xf32>
      %cst_15 = arith.constant dense<0.000000e+00> : vector<4x16xf32>
      %38 = vector.multi_reduction <add>, %37, %cst_15 [2] : vector<4x16x16xf32> to vector<4x16xf32>
      %39 = vector.shape_cast %38 : vector<4x16xf32> to vector<4x16x1xf32>
      %40 = tpu.reciprocal %39 {approx = true} : vector<4x16x1xf32> -> vector<4x16x1xf32>
      %41 = vector.broadcast %40 : vector<4x16x1xf32> to vector<4x16x16xf32>
      %42 = arith.mulf %37, %41 : vector<4x16x16xf32>
      %43 = arith.truncf %42 : vector<4x16x16xf32> to vector<4x16x16xbf16>
      "tpu.trace_start"() <{level = 10 : i32, message = "bqk,bkd->bqd"}> : () -> ()
      %cst_16 = arith.constant dense<0.000000e+00> : vector<4x16x16xf32>
      %44 = tpu.matmul %43, %26, %cst_16 {dimension_numbers = #tpu.dot_dimension_numbers<[2], [1], [1], [2], [0, 0, 0, 1, 1, 2], [0], [0]>} : vector<4x16x16xbf16>, vector<4x16x16xbf16>, vector<4x16x16xf32> -> vector<4x16x16xf32>
      "tpu.trace_stop"() : () -> ()
      %45 = vector.extract_strided_slice %16 {offsets = [0, 0, 16], sizes = [4, 16, 16], strides = [1, 1, 1]} : vector<4x16x96xf32> to vector<4x16x16xf32>
      %46 = arith.truncf %45 : vector<4x16x16xf32> to vector<4x16x16xbf16>
      %47 = vector.extract_strided_slice %16 {offsets = [0, 0, 48], sizes = [4, 16, 16], strides = [1, 1, 1]} : vector<4x16x96xf32> to vector<4x16x16xf32>
      %48 = arith.truncf %47 : vector<4x16x16xf32> to vector<4x16x16xbf16>
      %49 = vector.extract_strided_slice %16 {offsets = [0, 0, 80], sizes = [4, 16, 16], strides = [1, 1, 1]} : vector<4x16x96xf32> to vector<4x16x16xf32>
      %50 = arith.truncf %49 : vector<4x16x16xf32> to vector<4x16x16xbf16>
      "tpu.trace_start"() <{level = 10 : i32, message = "bqd,bkd->bqk"}> : () -> ()
      %cst_17 = arith.constant dense<0.000000e+00> : vector<4x16x16xf32>
      %51 = tpu.matmul %46, %48, %cst_17 {dimension_numbers = #tpu.dot_dimension_numbers<[2], [2], [1], [1], [0, 0, 0, 1, 1, 1], [0], [0]>} : vector<4x16x16xbf16>, vector<4x16x16xbf16>, vector<4x16x16xf32> -> vector<4x16x16xf32>
      "tpu.trace_stop"() : () -> ()
      %52 = vector.extract_strided_slice %20 {offsets = [1, 0, 0], sizes = [1, 16, 16], strides = [1, 1, 1]} : vector<2x16x16xf32> to vector<1x16x16xf32>
      %53 = vector.shape_cast %52 : vector<1x16x16xf32> to vector<16x16xf32>
      %54 = vector.shape_cast %53 : vector<16x16xf32> to vector<1x16x16xf32>
      %55 = vector.broadcast %54 : vector<1x16x16xf32> to vector<4x16x16xf32>
      %56 = arith.addf %51, %55 : vector<4x16x16xf32>
      %cst_18 = arith.constant dense<0xFF800000> : vector<4x16xf32>
      %57 = vector.multi_reduction <maximumf>, %56, %cst_18 [2] : vector<4x16x16xf32> to vector<4x16xf32>
      %58 = vector.shape_cast %57 : vector<4x16xf32> to vector<4x16x1xf32>
      %59 = vector.broadcast %58 : vector<4x16x1xf32> to vector<4x16x16xf32>
      %60 = arith.subf %56, %59 : vector<4x16x16xf32>
      %61 = math.exp %60 : vector<4x16x16xf32>
      %cst_19 = arith.constant dense<0.000000e+00> : vector<4x16xf32>
      %62 = vector.multi_reduction <add>, %61, %cst_19 [2] : vector<4x16x16xf32> to vector<4x16xf32>
      %63 = vector.shape_cast %62 : vector<4x16xf32> to vector<4x16x1xf32>
      %64 = tpu.reciprocal %63 {approx = true} : vector<4x16x1xf32> -> vector<4x16x1xf32>
      %65 = vector.broadcast %64 : vector<4x16x1xf32> to vector<4x16x16xf32>
      %66 = arith.mulf %61, %65 : vector<4x16x16xf32>
      %67 = arith.truncf %66 : vector<4x16x16xf32> to vector<4x16x16xbf16>
      "tpu.trace_start"() <{level = 10 : i32, message = "bqk,bkd->bqd"}> : () -> ()
      %cst_20 = arith.constant dense<0.000000e+00> : vector<4x16x16xf32>
      %68 = tpu.matmul %67, %50, %cst_20 {dimension_numbers = #tpu.dot_dimension_numbers<[2], [1], [1], [2], [0, 0, 0, 1, 1, 2], [0], [0]>} : vector<4x16x16xbf16>, vector<4x16x16xbf16>, vector<4x16x16xf32> -> vector<4x16x16xf32>
      "tpu.trace_stop"() : () -> ()
      %69 = tpu.concatenate %44, %68 in 2 : vector<4x16x16xf32>, vector<4x16x16xf32> -> vector<4x16x32xf32>
      %70 = vector.shape_cast %69 : vector<4x16x32xf32> to vector<64x32xf32>
      %71 = arith.mulf %70, %70 : vector<64x32xf32>
      %72 = arith.mulf %70, %71 : vector<64x32xf32>
      %cst_21 = arith.constant 4.471500e-02 : f32
      %73 = vector.broadcast %cst_21 : f32 to vector<64x32xf32>
      %74 = arith.mulf %73, %72 : vector<64x32xf32>
      %75 = arith.addf %70, %74 : vector<64x32xf32>
      %cst_22 = arith.constant 0.797884583 : f32
      %76 = vector.broadcast %cst_22 : f32 to vector<64x32xf32>
      %77 = arith.mulf %76, %75 : vector<64x32xf32>
      %78 = math.tanh %77 : vector<64x32xf32>
      %cst_23 = arith.constant 1.000000e+00 : f32
      %79 = vector.broadcast %cst_23 : f32 to vector<64x32xf32>
      %80 = arith.addf %79, %78 : vector<64x32xf32>
      %cst_24 = arith.constant 5.000000e-01 : f32
      %81 = vector.broadcast %cst_24 : f32 to vector<64x32xf32>
      %82 = arith.mulf %81, %80 : vector<64x32xf32>
      %83 = arith.mulf %70, %82 : vector<64x32xf32>
      %84 = arith.truncf %83 : vector<64x32xf32> to vector<64x32xbf16>
      %85 = arith.index_cast %arg12 : i32 to index
      %c0_25 = arith.constant 0 : index
      %c0_26 = arith.constant 0 : index
      %86 = vector.load %arg5[%85, %c0_25, %c0_26] : memref<2x32x32xbf16, #tpu.memory_space<vmem>>, vector<1x32x32xbf16>
      %87 = vector.shape_cast %86 : vector<1x32x32xbf16> to vector<32x32xbf16>
      %cst_27 = arith.constant dense<0.000000e+00> : vector<64x32xf32>
      %88 = tpu.matmul %84, %87, %cst_27 {dimension_numbers = #tpu.dot_dimension_numbers<[1], [0], [0], [1], [0, 0, 1, 1], [], []>} : vector<64x32xbf16>, vector<32x32xbf16>, vector<64x32xf32> -> vector<64x32xf32>
      %89 = arith.index_cast %arg12 : i32 to index
      %c0_28 = arith.constant 0 : index
      %c0_29 = arith.constant 0 : index
      %90 = vector.load %arg6[%89, %c0_28, %c0_29] : memref<2x1x32xf32, #tpu.memory_space<vmem>>, vector<1x1x32xf32>
      %91 = vector.shape_cast %90 : vector<1x1x32xf32> to vector<1x32xf32>
      %92 = vector.broadcast %91 : vector<1x32xf32> to vector<64x32xf32>
      %93 = arith.addf %88, %92 : vector<64x32xf32>
      %94 = arith.addf %93, %arg13 : vector<64x32xf32>
      %95 = arith.truncf %94 : vector<64x32xf32> to vector<64x32xbf16>
      %96 = arith.index_cast %arg12 : i32 to index
      %c0_30 = arith.constant 0 : index
      %c0_31 = arith.constant 0 : index
      %97 = vector.load %arg7[%96, %c0_30, %c0_31] : memref<2x32x64xbf16, #tpu.memory_space<vmem>>, vector<1x32x64xbf16>
      %98 = vector.shape_cast %97 : vector<1x32x64xbf16> to vector<32x64xbf16>
      %cst_32 = arith.constant dense<0.000000e+00> : vector<64x64xf32>
      %99 = tpu.matmul %95, %98, %cst_32 {dimension_numbers = #tpu.dot_dimension_numbers<[1], [0], [0], [1], [0, 0, 1, 1], [], []>} : vector<64x32xbf16>, vector<32x64xbf16>, vector<64x64xf32> -> vector<64x64xf32>
      %100 = arith.index_cast %arg12 : i32 to index
      %c0_33 = arith.constant 0 : index
      %c0_34 = arith.constant 0 : index
      %101 = vector.load %arg8[%100, %c0_33, %c0_34] : memref<2x1x64xf32, #tpu.memory_space<vmem>>, vector<1x1x64xf32>
      %102 = vector.shape_cast %101 : vector<1x1x64xf32> to vector<1x64xf32>
      %103 = vector.broadcast %102 : vector<1x64xf32> to vector<64x64xf32>
      %104 = arith.addf %99, %103 : vector<64x64xf32>
      %cst_35 = arith.constant 3.000000e+00 : f32
      %105 = vector.broadcast %cst_35 : f32 to vector<64x64xf32>
      %106 = arith.addf %104, %105 : vector<64x64xf32>
      %cst_36 = arith.constant 0.000000e+00 : f32
      %cst_37 = arith.constant 6.000000e+00 : f32
      %107 = vector.broadcast %cst_36 : f32 to vector<64x64xf32>
      %108 = arith.maximumf %107, %106 : vector<64x64xf32>
      %109 = vector.broadcast %cst_37 : f32 to vector<64x64xf32>
      %110 = arith.minimumf %109, %108 : vector<64x64xf32>
      %111 = arith.mulf %104, %110 : vector<64x64xf32>
      %cst_38 = arith.constant 0.166666672 : f32
      %112 = vector.broadcast %cst_38 : f32 to vector<64x64xf32>
      %113 = arith.mulf %111, %112 : vector<64x64xf32>
      %114 = arith.truncf %113 : vector<64x64xf32> to vector<64x64xbf16>
      %115 = arith.index_cast %arg12 : i32 to index
      %c0_39 = arith.constant 0 : index
      %c0_40 = arith.constant 0 : index
      %116 = vector.load %arg9[%115, %c0_39, %c0_40] : memref<2x64x32xbf16, #tpu.memory_space<vmem>>, vector<1x64x32xbf16>
      %117 = vector.shape_cast %116 : vector<1x64x32xbf16> to vector<64x32xbf16>
      %cst_41 = arith.constant dense<0.000000e+00> : vector<64x32xf32>
      %118 = tpu.matmul %114, %117, %cst_41 {dimension_numbers = #tpu.dot_dimension_numbers<[1], [0], [0], [1], [0, 0, 1, 1], [], []>} : vector<64x64xbf16>, vector<64x32xbf16>, vector<64x32xf32> -> vector<64x32xf32>
      %119 = arith.index_cast %arg12 : i32 to index
      %c0_42 = arith.constant 0 : index
      %c0_43 = arith.constant 0 : index
      %120 = vector.load %arg10[%119, %c0_42, %c0_43] : memref<2x1x32xf32, #tpu.memory_space<vmem>>, vector<1x1x32xf32>
      %121 = vector.shape_cast %120 : vector<1x1x32xf32> to vector<1x32xf32>
      %122 = vector.broadcast %121 : vector<1x32xf32> to vector<64x32xf32>
      %123 = arith.addf %118, %122 : vector<64x32xf32>
      %124 = arith.addf %123, %94 : vector<64x32xf32>
      scf.yield %124 : vector<64x32xf32>
    }
    %c2_i32_2 = arith.constant 2 : i32
    %4 = vector.shape_cast %3 : vector<64x32xf32> to vector<4x16x32xf32>
    %c0_3 = arith.constant 0 : index
    %c0_4 = arith.constant 0 : index
    %c0_5 = arith.constant 0 : index
    %5 = vector.load %arg11[%c0_3, %c0_4, %c0_5] : memref<4x16x32xf32, #tpu.memory_space<vmem>>, vector<4x16x32xf32>
    tpu.vector_store %arg11[%c0_3, %c0_4, %c0_5], %4 {strides = array<i32>} : memref<4x16x32xf32, #tpu.memory_space<vmem>>, vector<4x16x32xf32>,
    return
  }
  func.func @transform_0(%arg0: i32) -> (i32, i32, i32) {
    %c0_i32 = arith.constant 0 : i32
    %c0_i32_0 = arith.constant 0 : i32
    %c0_i32_1 = arith.constant 0 : i32
    return %arg0, %c0_i32, %c0_i32_0 : i32, i32, i32
  }
  func.func @transform_1(%arg0: i32) -> (i32, i32, i32) {
    %c0_i32 = arith.constant 0 : i32
    %c0_i32_0 = arith.constant 0 : i32
    %c0_i32_1 = arith.constant 0 : i32
    %c0_i32_2 = arith.constant 0 : i32
    return %c0_i32, %c0_i32_0, %c0_i32_1 : i32, i32, i32
  }
  func.func @transform_2(%arg0: i32) -> (i32, i32, i32) {
    %c0_i32 = arith.constant 0 : i32
    %c0_i32_0 = arith.constant 0 : i32
    %c0_i32_1 = arith.constant 0 : i32
    %c0_i32_2 = arith.constant 0 : i32
    return %c0_i32, %c0_i32_0, %c0_i32_1 : i32, i32, i32
  }
  func.func @transform_3(%arg0: i32) -> (i32, i32, i32, i32) {
    %c0_i32 = arith.constant 0 : i32
    %c0_i32_0 = arith.constant 0 : i32
    %c0_i32_1 = arith.constant 0 : i32
    %c0_i32_2 = arith.constant 0 : i32
    %c0_i32_3 = arith.constant 0 : i32
    return %c0_i32, %c0_i32_0, %c0_i32_1, %c0_i32_2 : i32, i32, i32, i32
  }
  func.func @transform_4(%arg0: i32) -> (i32, i32, i32) {
    %c0_i32 = arith.constant 0 : i32
    %c0_i32_0 = arith.constant 0 : i32
    %c0_i32_1 = arith.constant 0 : i32
    %c0_i32_2 = arith.constant 0 : i32
    return %c0_i32, %c0_i32_0, %c0_i32_1 : i32, i32, i32
  }
  func.func @transform_5(%arg0: i32) -> (i32, i32, i32) {
    %c0_i32 = arith.constant 0 : i32
    %c0_i32_0 = arith.constant 0 : i32
    %c0_i32_1 = arith.constant 0 : i32
    %c0_i32_2 = arith.constant 0 : i32
    return %c0_i32, %c0_i32_0, %c0_i32_1 : i32, i32, i32
  }
  func.func @transform_6(%arg0: i32) -> (i32, i32, i32) {
    %c0_i32 = arith.constant 0 : i32
    %c0_i32_0 = arith.constant 0 : i32
    %c0_i32_1 = arith.constant 0 : i32
    %c0_i32_2 = arith.constant 0 : i32
    return %c0_i32, %c0_i32_0, %c0_i32_1 : i32, i32, i32
  }
  func.func @transform_7(%arg0: i32) -> (i32, i32, i32) {
    %c0_i32 = arith.constant 0 : i32
    %c0_i32_0 = arith.constant 0 : i32
    %c0_i32_1 = arith.constant 0 : i32
    %c0_i32_2 = arith.constant 0 : i32
    return %c0_i32, %c0_i32_0, %c0_i32_1 : i32, i32, i32
  }
  func.func @transform_8(%arg0: i32) -> (i32, i32, i32) {
    %c0_i32 = arith.constant 0 : i32
    %c0_i32_0 = arith.constant 0 : i32
    %c0_i32_1 = arith.constant 0 : i32
    %c0_i32_2 = arith.constant 0 : i32
    return %c0_i32, %c0_i32_0, %c0_i32_1 : i32, i32, i32
  }
  func.func @transform_9(%arg0: i32) -> (i32, i32, i32) {
    %c0_i32 = arith.constant 0 : i32
    %c0_i32_0 = arith.constant 0 : i32
    %c0_i32_1 = arith.constant 0 : i32
    %c0_i32_2 = arith.constant 0 : i32
    return %c0_i32, %c0_i32_0, %c0_i32_1 : i32, i32, i32
  }
  func.func @transform_10(%arg0: i32) -> (i32, i32, i32) {
    %c0_i32 = arith.constant 0 : i32
    %c0_i32_0 = arith.constant 0 : i32
    %c0_i32_1 = arith.constant 0 : i32
    return %arg0, %c0_i32, %c0_i32_0 : i32, i32, i32
  }
}

</mosaic_0001>

<llo_original>
// kernel: transformer_forward.1
$region0: #{transformer_forward.1}
  #allocation0 [shape = 'u32[]', space=smem, size = 0x4, offset = 0x4, fixed_abs, tag = 'smem constant byte address 0x4 - core index']
  #allocation1 [shape = 'u32[72,128]{1,0:T(1,128)}', space=vmem, size = 0x9000, scoped, tag = 'internal scratch']
  %s0 = inlined_call_operand.hbm [shape: f32[8,16,32], index: 0, kind: input, shape index: {}]
  %s1 = inlined_call_operand.vmem [shape: bf16[2,32,96], index: 1, kind: input, shape index: {}]
  %s2 = inlined_call_operand.vmem [shape: f32[2,1,96], index: 2, kind: input, shape index: {}]
  %s3 = inlined_call_operand.vmem [shape: bf16[2,2,16,16], index: 3, kind: input, shape index: {}]
  %s4 = inlined_call_operand.vmem [shape: bf16[2,32,32], index: 4, kind: input, shape index: {}]
  %s5 = inlined_call_operand.hbm [shape: f32[2,1,32], index: 5, kind: input, shape index: {}]
  %s6 = inlined_call_operand.hbm [shape: bf16[2,32,64], index: 6, kind: input, shape index: {}]
  %s7 = inlined_call_operand.hbm [shape: f32[2,1,64], index: 7, kind: input, shape index: {}]
  %s8 = inlined_call_operand.vmem [shape: bf16[2,64,32], index: 8, kind: input, shape index: {}]
  %s9 = inlined_call_operand.hbm [shape: f32[2,1,32], index: 9, kind: input, shape index: {}]
  %s10 = inlined_call_operand.hbm [shape: f32[8,16,32], index: 10, kind: output, shape index: {}]
  %s11 = sld [smem:[#allocation0]]
  $region100: #{transformer_forward.1} parent=0
    _
  %s13 = ssub.s32 1, %s11
  %s14 = scalar_select 0, %s13, %s11
  $region1: #{transformer_forward.1} parent=0
    #allocation2 [shape = 'u8[65536]{0}', space=vmem, size = 0x10000, scoped, tag = 'input window, operand 0']
    #allocation3 [shape = 's32[2]{0}', space=sflag, size = 0x8, scoped, tag = 'scoped memory for transformer_forward.1']
    #allocation4 [shape = 's32[2]{0}', space=sflag, size = 0x8, scoped, tag = 'scoped memory for transformer_forward.1']
    #allocation5 [shape = 'u8[1024]{0}', space=vmem, size = 0x400, scoped, tag = 'input window, operand 5, single buffered']
    #allocation6 [shape = 's32[1]{0}', space=sflag, size = 0x4, scoped, tag = 'scoped memory for transformer_forward.1']
    #allocation7 [shape = 'u8[16384]{0}', space=vmem, size = 0x4000, scoped, tag = 'input window, operand 6, single buffered']
    #allocation8 [shape = 'u8[1024]{0}', space=vmem, size = 0x400, scoped, tag = 'input window, operand 7, single buffered']
    #allocation9 [shape = 's32[1]{0}', space=sflag, size = 0x4, scoped, tag = 'scoped memory for transformer_forward.1']
    #allocation10 [shape = 'u8[1024]{0}', space=vmem, size = 0x400, scoped, tag = 'input window, operand 9, single buffered']
    #allocation11 [shape = 'u8[65536]{0}', space=vmem, size = 0x10000, scoped, tag = 'output window, operand 0']
    %15 = vsyncpa [#allocation3], 0
    %s16 = scalar_lea.sflag [#allocation3], 1
    %17 = vsyncpa %s16, 0
    %18 = vsyncpa [#allocation6], 0
    %19 = vsyncpa [#allocation9], 0
    %20 = vsyncpa [#allocation4], 0
    %s21 = scalar_lea.sflag [#allocation4], 1
    %22 = vsyncpa %s21, 0
    loop: start=0, step=1, limit=4
    $region2: #{transformer_forward.1} parent=1 // loop_pre_header
      _
    $region3: #{transformer_forward.1} parent=1 // loop_header
      %s24 = sphi 0, %s28
      %p25 = scmp.ge.s32.totalorder %s24, 4
      %s34 = sphi 0, %s36
      %s37 = sphi 0, %s34
      %s38 = sphi 0, %s37
      %s54 = sphi 0, %s38
      %s58 = sphi 0, %s58
      %s60 = sphi 0, %s58
      %s61 = sphi 0, %s60
      %s75 = sphi 0, %s61
      %s79 = sphi 0, %s79
      %s81 = sphi 0, %s79
      %s82 = sphi 0, %s81
      %s96 = sphi 0, %s82
      %s100 = sphi 0, %s100
      %s102 = sphi 0, %s100
      %s103 = sphi 0, %s102
      %s117 = sphi 0, %s103
      %s121 = sphi 0, %s121
      %s123 = sphi 0, %s121
      %s124 = sphi 0, %s123
      %s138 = sphi 0, %s124
      %s142 = sphi 0, %s142
      %s144 = sphi 0, %s142
      %s145 = sphi 0, %s144
      %s159 = sphi 0, %s145
      %s163 = sphi 0, %s163
      %s165 = sphi 0, %s163
      %s166 = sphi 0, %s165
      %s180 = sphi 0, %s166
      %s184 = sphi 0, %s184
      %s186 = sphi 0, %s184
      %s187 = sphi 0, %s186
      %s201 = sphi 0, %s187
      %s205 = sphi 0, %s205
      %s207 = sphi 0, %s205
      %s208 = sphi 0, %s207
      %s222 = sphi 0, %s208
      %s226 = sphi 0, %s226
      %s228 = sphi 0, %s226
      %s229 = sphi 0, %s228
      %s243 = sphi 0, %s229
      %s249 = sphi 0, %s251
      %s252 = sphi 0, %s249
      %s253 = sphi 0, %s252
      %s269 = sphi 0, %s253
    $region4: #{transformer_forward.1} parent=1 // loop_header_branch
      %27 = sbr.rel (%p25) target = $region8
    $region5: #{transformer_forward.1} parent=1 // loop_body
      %s29 = ssub.s32 %s24, 1
      %s30 = ssub.s32 %s24, 2
      %s31 = sadd.s32 %s24, 1
      %s32 = ssub.s32 %s24, %s31
      %p33 = scmp.eq.s32.totalorder %s32, 0
      %s35 = sadd.s32 %s34, 1
      %s36 = scalar_select %p33, %s34, %s35
      %p39 = pneg %p33
      %p40 = scmp.eq.s32.totalorder %s24, 1
      %p41 = por %p39, %p40
      %p42 = scmp.ne.s32.totalorder %s34, %s37
      %p43 = scmp.eq.s32.totalorder %s24, 0
      %p44 = por %p42, %p43
      %p45 = scmp.ne.s32.totalorder %s34, %s37
      %p46 = scmp.eq.s32.totalorder %s29, 1
      %p47 = por %p45, %p46
      %p48 = scmp.ne.s32.totalorder %s37, %s38
      %p49 = scmp.eq.s32.totalorder %s29, 0
      %p50 = por %p48, %p49
      %p51 = scmp.ne.s32.totalorder %s37, %s38
      %p52 = scmp.eq.s32.totalorder %s30, 1
      %p53 = por %p51, %p52
      %p55 = scmp.ne.s32.totalorder %s38, %s54
      %p56 = scmp.eq.s32.totalorder %s30, 0
      %p57 = por %p55, %p56
      %s59 = sadd.s32 %s58, 1
      %p62 = scmp.eq.s32.totalorder %s24, 1
      %p63 = scmp.ne.s32.totalorder %s58, %s60
      %p64 = scmp.eq.s32.totalorder %s24, 0
      %p65 = por %p63, %p64
      %p66 = scmp.ne.s32.totalorder %s58, %s60
      %p67 = scmp.eq.s32.totalorder %s29, 1
      %p68 = por %p66, %p67
      %p69 = scmp.ne.s32.totalorder %s60, %s61
      %p70 = scmp.eq.s32.totalorder %s29, 0
      %p71 = por %p69, %p70
      %p72 = scmp.ne.s32.totalorder %s60, %s61
      %p73 = scmp.eq.s32.totalorder %s30, 1
      %p74 = por %p72, %p73
      %p76 = scmp.ne.s32.totalorder %s61, %s75
      %p77 = scmp.eq.s32.totalorder %s30, 0
      %p78 = por %p76, %p77
      %s80 = sadd.s32 %s79, 1
      %p83 = scmp.eq.s32.totalorder %s24, 1
      %p84 = scmp.ne.s32.totalorder %s79, %s81
      %p85 = scmp.eq.s32.totalorder %s24, 0
      %p86 = por %p84, %p85
      %p87 = scmp.ne.s32.totalorder %s79, %s81
      %p88 = scmp.eq.s32.totalorder %s29, 1
      %p89 = por %p87, %p88
      %p90 = scmp.ne.s32.totalorder %s81, %s82
      %p91 = scmp.eq.s32.totalorder %s29, 0
      %p92 = por %p90, %p91
      %p93 = scmp.ne.s32.totalorder %s81, %s82
      %p94 = scmp.eq.s32.totalorder %s30, 1
      %p95 = por %p93, %p94
      %p97 = scmp.ne.s32.totalorder %s82, %s96
      %p98 = scmp.eq.s32.totalorder %s30, 0
      %p99 = por %p97, %p98
      %s101 = sadd.s32 %s100, 1
      %p104 = scmp.eq.s32.totalorder %s24, 1
      %p105 = scmp.ne.s32.totalorder %s100, %s102
      %p106 = scmp.eq.s32.totalorder %s24, 0
      %p107 = por %p105, %p106
      %p108 = scmp.ne.s32.totalorder %s100, %s102
      %p109 = scmp.eq.s32.totalorder %s29, 1
      %p110 = por %p108, %p109
      %p111 = scmp.ne.s32.totalorder %s102, %s103
      %p112 = scmp.eq.s32.totalorder %s29, 0
      %p113 = por %p111, %p112
      %p114 = scmp.ne.s32.totalorder %s102, %s103
      %p115 = scmp.eq.s32.totalorder %s30, 1
      %p116 = por %p114, %p115
      %p118 = scmp.ne.s32.totalorder %s103, %s117
      %p119 = scmp.eq.s32.totalorder %s30, 0
      %p120 = por %p118, %p119
      %s122 = sadd.s32 %s121, 1
      %p125 = scmp.eq.s32.totalorder %s24, 1
      %p126 = scmp.ne.s32.totalorder %s121, %s123
      %p127 = scmp.eq.s32.totalorder %s24, 0
      %p128 = por %p126, %p127
      %p129 = scmp.ne.s32.totalorder %s121, %s123
      %p130 = scmp.eq.s32.totalorder %s29, 1
      %p131 = por %p129, %p130
      %p132 = scmp.ne.s32.totalorder %s123, %s124
      %p133 = scmp.eq.s32.totalorder %s29, 0
      %p134 = por %p132, %p133
      %p135 = scmp.ne.s32.totalorder %s123, %s124
      %p136 = scmp.eq.s32.totalorder %s30, 1
      %p137 = por %p135, %p136
      %p139 = scmp.ne.s32.totalorder %s124, %s138
      %p140 = scmp.eq.s32.totalorder %s30, 0
      %p141 = por %p139, %p140
      %s143 = sadd.s32 %s142, 1
      %p146 = scmp.eq.s32.totalorder %s24, 1
      %p147 = scmp.ne.s32.totalorder %s142, %s144
      %p148 = scmp.eq.s32.totalorder %s24, 0
      %p149 = por %p147, %p148
      %p150 = scmp.ne.s32.totalorder %s142, %s144
      %p151 = scmp.eq.s32.totalorder %s29, 1
      %p152 = por %p150, %p151
      %p153 = scmp.ne.s32.totalorder %s144, %s145
      %p154 = scmp.eq.s32.totalorder %s29, 0
      %p155 = por %p153, %p154
      %p156 = scmp.ne.s32.totalorder %s144, %s145
      %p157 = scmp.eq.s32.totalorder %s30, 1
      %p158 = por %p156, %p157
      %p160 = scmp.ne.s32.totalorder %s145, %s159
      %p161 = scmp.eq.s32.totalorder %s30, 0
      %p162 = por %p160, %p161
      %s164 = sadd.s32 %s163, 1
      %p167 = scmp.eq.s32.totalorder %s24, 1
      %p168 = scmp.ne.s32.totalorder %s163, %s165
      %p169 = scmp.eq.s32.totalorder %s24, 0
      %p170 = por %p168, %p169
      %p171 = scmp.ne.s32.totalorder %s163, %s165
      %p172 = scmp.eq.s32.totalorder %s29, 1
      %p173 = por %p171, %p172
      %p174 = scmp.ne.s32.totalorder %s165, %s166
      %p175 = scmp.eq.s32.totalorder %s29, 0
      %p176 = por %p174, %p175
      %p177 = scmp.ne.s32.totalorder %s165, %s166
      %p178 = scmp.eq.s32.totalorder %s30, 1
      %p179 = por %p177, %p178
      %p181 = scmp.ne.s32.totalorder %s166, %s180
      %p182 = scmp.eq.s32.totalorder %s30, 0
      %p183 = por %p181, %p182
      %s185 = sadd.s32 %s184, 1
      %p188 = scmp.eq.s32.totalorder %s24, 1
      %p189 = scmp.ne.s32.totalorder %s184, %s186
      %p190 = scmp.eq.s32.totalorder %s24, 0
      %p191 = por %p189, %p190
      %p192 = scmp.ne.s32.totalorder %s184, %s186
      %p193 = scmp.eq.s32.totalorder %s29, 1
      %p194 = por %p192, %p193
      %p195 = scmp.ne.s32.totalorder %s186, %s187
      %p196 = scmp.eq.s32.totalorder %s29, 0
      %p197 = por %p195, %p196
      %p198 = scmp.ne.s32.totalorder %s186, %s187
      %p199 = scmp.eq.s32.totalorder %s30, 1
      %p200 = por %p198, %p199
      %p202 = scmp.ne.s32.totalorder %s187, %s201
      %p203 = scmp.eq.s32.totalorder %s30, 0
      %p204 = por %p202, %p203
      %s206 = sadd.s32 %s205, 1
      %p209 = scmp.eq.s32.totalorder %s24, 1
      %p210 = scmp.ne.s32.totalorder %s205, %s207
      %p211 = scmp.eq.s32.totalorder %s24, 0
      %p212 = por %p210, %p211
      %p213 = scmp.ne.s32.totalorder %s205, %s207
      %p214 = scmp.eq.s32.totalorder %s29, 1
      %p215 = por %p213, %p214
      %p216 = scmp.ne.s32.totalorder %s207, %s208
      %p217 = scmp.eq.s32.totalorder %s29, 0
      %p218 = por %p216, %p217
      %p219 = scmp.ne.s32.totalorder %s207, %s208
      %p220 = scmp.eq.s32.totalorder %s30, 1
      %p221 = por %p219, %p220
      %p223 = scmp.ne.s32.totalorder %s208, %s222
      %p224 = scmp.eq.s32.totalorder %s30, 0
      %p225 = por %p223, %p224
      %s227 = sadd.s32 %s226, 1
      %p230 = scmp.eq.s32.totalorder %s24, 1
      %p231 = scmp.ne.s32.totalorder %s226, %s228
      %p232 = scmp.eq.s32.totalorder %s24, 0
      %p233 = por %p231, %p232
      %p234 = scmp.ne.s32.totalorder %s226, %s228
      %p235 = scmp.eq.s32.totalorder %s29, 1
      %p236 = por %p234, %p235
      %p237 = scmp.ne.s32.totalorder %s228, %s229
      %p238 = scmp.eq.s32.totalorder %s29, 0
      %p239 = por %p237, %p238
      %p240 = scmp.ne.s32.totalorder %s228, %s229
      %p241 = scmp.eq.s32.totalorder %s30, 1
      %p242 = por %p240, %p241
      %p244 = scmp.ne.s32.totalorder %s229, %s243
      %p245 = scmp.eq.s32.totalorder %s30, 0
      %p246 = por %p244, %p245
      %s247 = ssub.s32 %s24, %s31
      %p248 = scmp.eq.s32.totalorder %s247, 0
      %s250 = sadd.s32 %s249, 1
      %s251 = scalar_select %p248, %s249, %s250
      %p254 = pneg %p248
      %p255 = scmp.eq.s32.totalorder %s24, 1
      %p256 = por %p254, %p255
      %p257 = scmp.ne.s32.totalorder %s249, %s252
      %p258 = scmp.eq.s32.totalorder %s24, 0
      %p259 = por %p257, %p258
      %p260 = scmp.ne.s32.totalorder %s249, %s252
      %p261 = scmp.eq.s32.totalorder %s29, 1
      %p262 = por %p260, %p261
      %p263 = scmp.ne.s32.totalorder %s252, %s253
      %p264 = scmp.eq.s32.totalorder %s29, 0
      %p265 = por %p263, %p264
      %p266 = scmp.ne.s32.totalorder %s252, %s253
      %p267 = scmp.eq.s32.totalorder %s30, 1
      %p268 = por %p266, %p267
      %p270 = scmp.ne.s32.totalorder %s253, %s269
      %p271 = scmp.eq.s32.totalorder %s30, 0
      %p272 = por %p270, %p271
      %p273 = scmp.le.s32.totalorder 1, %s24
      %p274 = scmp.lt.s32.totalorder %s24, 3
      %p275 = pnand %p273, %p274
      %p276 = pneg %p275
      // Predicated region
      $region9: #{transformer_forward.1} parent=5 // pred_check
        _
      $region10: #{transformer_forward.1} parent=5 // pred_check_branch
        %278 = sbr.rel (%p275) target = $region12
      $region11: #{transformer_forward.1} parent=5 // pred_region
        %s279 = ssub.s32 %s24, 1
        // Predicated region
        $region13: #{transformer_forward.1} parent=11 // pred_check
          %p280 = pneg %p71
        $region14: #{transformer_forward.1} parent=11 // pred_check_branch
          %282 = sbr.rel (%p280) target = $region16
        $region15: #{transformer_forward.1} parent=11 // pred_region
          _
        $region16: #{transformer_forward.1} parent=11 // pred_fallthru
          _
        // Predicated region
        $region17: #{transformer_forward.1} parent=11 // pred_check
          %p283 = pneg %p92
        $region18: #{transformer_forward.1} parent=11 // pred_check_branch
          %285 = sbr.rel (%p283) target = $region20
        $region19: #{transformer_forward.1} parent=11 // pred_region
          _
        $region20: #{transformer_forward.1} parent=11 // pred_fallthru
          _
        // Predicated region
        $region21: #{transformer_forward.1} parent=11 // pred_check
          %p286 = pneg %p113
        $region22: #{transformer_forward.1} parent=11 // pred_check_branch
          %288 = sbr.rel (%p286) target = $region24
        $region23: #{transformer_forward.1} parent=11 // pred_region
          _
        $region24: #{transformer_forward.1} parent=11 // pred_fallthru
          _
        // Predicated region
        $region25: #{transformer_forward.1} parent=11 // pred_check
          %p289 = pneg %p134
        $region26: #{transformer_forward.1} parent=11 // pred_check_branch
          %291 = sbr.rel (%p289) target = $region28
        $region27: #{transformer_forward.1} parent=11 // pred_region
          _
        $region28: #{transformer_forward.1} parent=11 // pred_fallthru
          _
        // Predicated region
        $region29: #{transformer_forward.1} parent=11 // pred_check
          %p292 = pneg %p155
        $region30: #{transformer_forward.1} parent=11 // pred_check_branch
          %294 = sbr.rel (%p292) target = $region32
        $region31: #{transformer_forward.1} parent=11 // pred_region
          %296 = vsyncadd [#allocation6], 0
          %s297 = sshll.u32 %s5, 4
          %s298 = int_to_ptr.hbm [resolvable:$true] %s297
          %s299 = sshll.u32 [#allocation5], 4
          %s300 = int_to_ptr.vmem [resolvable:$true] %s299
          %305 = dma.hbm_to_vmem [thread:$0]  %s298, 32, %s300, [#allocation6], 16, 16, 1
        $region32: #{transformer_forward.1} parent=11 // pred_fallthru
          _
        // Predicated region
        $region33: #{transformer_forward.1} parent=11 // pred_check
          %p306 = pneg %p176
        $region34: #{transformer_forward.1} parent=11 // pred_check_branch
          %308 = sbr.rel (%p306) target = $region36
        $region35: #{transformer_forward.1} parent=11 // pred_region
          %310 = vsyncadd [#allocation6], 0
          %s311 = sshll.u32 %s6, 4
          %s312 = int_to_ptr.hbm [resolvable:$true] %s311
          %s313 = sshll.u32 [#allocation7], 4
          %s314 = int_to_ptr.vmem [resolvable:$true] %s313
          %319 = dma.hbm_to_vmem [thread:$0]  %s312, 512, %s314, [#allocation6], 64, 64, 4
        $region36: #{transformer_forward.1} parent=11 // pred_fallthru
          _
        // Predicated region
        $region37: #{transformer_forward.1} parent=11 // pred_check
          %p320 = pneg %p197
        $region38: #{transformer_forward.1} parent=11 // pred_check_branch
          %322 = sbr.rel (%p320) target = $region40
        $region39: #{transformer_forward.1} parent=11 // pred_region
          %324 = vsyncadd [#allocation9], 0
          %s325 = sshll.u32 %s7, 4
          %s326 = int_to_ptr.hbm [resolvable:$true] %s325
          %s327 = sshll.u32 [#allocation8], 4
          %s328 = int_to_ptr.vmem [resolvable:$true] %s327
          %333 = dma.hbm_to_vmem [thread:$0]  %s326, 32, %s328, [#allocation9], 16, 16, 1
        $region40: #{transformer_forward.1} parent=11 // pred_fallthru
          _
        // Predicated region
        $region41: #{transformer_forward.1} parent=11 // pred_check
          %p334 = pneg %p218
        $region42: #{transformer_forward.1} parent=11 // pred_check_branch
          %336 = sbr.rel (%p334) target = $region44
        $region43: #{transformer_forward.1} parent=11 // pred_region
          _
        $region44: #{transformer_forward.1} parent=11 // pred_fallthru
          _
        // Predicated region
        $region45: #{transformer_forward.1} parent=11 // pred_check
          %p337 = pneg %p239
        $region46: #{transformer_forward.1} parent=11 // pred_check_branch
          %339 = sbr.rel (%p337) target = $region48
        $region47: #{transformer_forward.1} parent=11 // pred_region
          %341 = vsyncadd [#allocation9], 0
          %s342 = sshll.u32 %s9, 4
          %s343 = int_to_ptr.hbm [resolvable:$true] %s342
          %s344 = sshll.u32 [#allocation10], 4
          %s345 = int_to_ptr.vmem [resolvable:$true] %s344
          %350 = dma.hbm_to_vmem [thread:$0]  %s343, 32, %s345, [#allocation9], 16, 16, 1
        $region48: #{transformer_forward.1} parent=11 // pred_fallthru
          _
      $region12: #{transformer_forward.1} parent=5 // pred_fallthru
        _
      %p351 = scmp.lt.s32.totalorder %s24, 2
      // Predicated region
      $region49: #{transformer_forward.1} parent=5 // pred_check
        %p352 = pneg %p351
      $region50: #{transformer_forward.1} parent=5 // pred_check_branch
        %354 = sbr.rel (%p352) target = $region52
      $region51: #{transformer_forward.1} parent=5 // pred_region
        // Predicated region
        $region53: #{transformer_forward.1} parent=51 // pred_check
          %p355 = pneg %p44
        $region54: #{transformer_forward.1} parent=51 // pred_check_branch
          %357 = sbr.rel (%p355) target = $region56
        $region55: #{transformer_forward.1} parent=51 // pred_region
          %s358 = sand.u32 %s34, 1
          %s359 = scalar_lea.sflag [#allocation3], %s358
          %s360 = sand.u32 %s34, 1
          %s361 = smul.addr %s360, 64
          %s362 = scalar_lea.vmem [#allocation2], %s361
          %s363 = smul.u32 4, %s24
          %365 = vsyncadd %s359, 0
          %s366 = smul.addr %s363, 2
          %s367 = smul.addr %s366, 8
          %s368 = scalar_lea.hbm %s0, %s367
          %s369 = sshll.u32 %s368, 4
          %s370 = int_to_ptr.hbm [resolvable:$true] %s369
          %s371 = sshll.u32 %s362, 4
          %s372 = int_to_ptr.vmem [resolvable:$true] %s371
          %377 = dma.hbm_to_vmem [thread:$0]  %s370, 1024, %s372, %s359, 128, 128, 8
        $region56: #{transformer_forward.1} parent=51 // pred_fallthru
          _
      $region52: #{transformer_forward.1} parent=5 // pred_fallthru
        _
      %p378 = scmp.le.s32.totalorder 1, %s24
      %p379 = scmp.lt.s32.totalorder %s24, 3
      %p380 = pnand %p378, %p379
      %p381 = pneg %p380
      // Predicated region
      $region57: #{transformer_forward.1} parent=5 // pred_check
        _
      $region58: #{transformer_forward.1} parent=5 // pred_check_branch
        %383 = sbr.rel (%p380) target = $region60
      $region59: #{transformer_forward.1} parent=5 // pred_region
        %s384 = ssub.s32 %s24, 1
        %s385 = sand.u32 %s37, 1
        %s386 = scalar_lea.sflag [#allocation3], %s385
        %s387 = sand.u32 %s37, 1
        %s388 = smul.addr %s387, 64
        %s389 = scalar_lea.vmem [#allocation2], %s388
        // Predicated region
        $region61: #{transformer_forward.1} parent=59 // pred_check
          %p390 = pneg %p50
        $region62: #{transformer_forward.1} parent=59 // pred_check_branch
          %392 = sbr.rel (%p390) target = $region64
        $region63: #{transformer_forward.1} parent=59 // pred_region
          %394 = dma.done %s386, 1024
        $region64: #{transformer_forward.1} parent=59 // pred_fallthru
          _
        // Predicated region
        $region65: #{transformer_forward.1} parent=59 // pred_check
          %p395 = pneg %p155
        $region66: #{transformer_forward.1} parent=59 // pred_check_branch
          %397 = sbr.rel (%p395) target = $region68
        $region67: #{transformer_forward.1} parent=59 // pred_region
          %399 = dma.done [#allocation6], 32
        $region68: #{transformer_forward.1} parent=59 // pred_fallthru
          _
        // Predicated region
        $region69: #{transformer_forward.1} parent=59 // pred_check
          %p400 = pneg %p176
        $region70: #{transformer_forward.1} parent=59 // pred_check_branch
          %402 = sbr.rel (%p400) target = $region72
        $region71: #{transformer_forward.1} parent=59 // pred_region
          %404 = dma.done [#allocation6], 512
        $region72: #{transformer_forward.1} parent=59 // pred_fallthru
          _
        // Predicated region
        $region73: #{transformer_forward.1} parent=59 // pred_check
          %p405 = pneg %p197
        $region74: #{transformer_forward.1} parent=59 // pred_check_branch
          %407 = sbr.rel (%p405) target = $region76
        $region75: #{transformer_forward.1} parent=59 // pred_region
          %409 = dma.done [#allocation9], 32
        $region76: #{transformer_forward.1} parent=59 // pred_fallthru
          _
        // Predicated region
        $region77: #{transformer_forward.1} parent=59 // pred_check
          %p410 = pneg %p239
        $region78: #{transformer_forward.1} parent=59 // pred_check_branch
          %412 = sbr.rel (%p410) target = $region80
        $region79: #{transformer_forward.1} parent=59 // pred_region
          %414 = dma.done [#allocation9], 32
        $region80: #{transformer_forward.1} parent=59 // pred_fallthru
          _
        %s415 = sand.u32 %s37, 1
        %s416 = scalar_lea.sflag [#allocation3], %s415
        %s417 = sand.u32 %s37, 1
        %s418 = smul.addr %s417, 64
        %s419 = scalar_lea.vmem [#allocation2], %s418
        %p420 = pneg %p50
        %p421 = pneg %p47
        %p422 = pneg %p71
        %p423 = pneg %p68
        %p424 = pneg %p92
        %p425 = pneg %p89
        %p426 = pneg %p113
        %p427 = pneg %p110
        %p428 = pneg %p134
        %p429 = pneg %p131
        %p430 = pneg %p155
        %p431 = pneg %p152
        %p432 = pneg %p176
        %p433 = pneg %p173
        %p434 = pneg %p197
        %p435 = pneg %p194
        %p436 = pneg %p218
        %p437 = pneg %p215
        %p438 = pneg %p239
        %p439 = pneg %p236
        %p440 = pneg %p265
        %p441 = pneg %p262
        %s442 = sand.u32 %s252, 1
        %s443 = scalar_lea.sflag [#allocation4], %s442
        %s444 = sand.u32 %s252, 1
        %s445 = smul.addr %s444, 64
        %s446 = scalar_lea.vmem [#allocation11], %s445
        %s447 = smul.u32 4, %s29
        %s448 = smul.u32 4, %s29
        %v450 = vld [vmem:[%s389] sm:$0xff]
        %v451 = vld [vmem:[%s389 + $0x8] sm:$0xff]
        %v452 = vld [vmem:[%s389 + $0x10] sm:$0xff]
        %v453 = vld [vmem:[%s389 + $0x18] sm:$0xff]
        %v454 = vld [vmem:[%s389 + $0x20] sm:$0xff]
        %v455 = vld [vmem:[%s389 + $0x28] sm:$0xff]
        %v456 = vld [vmem:[%s389 + $0x30] sm:$0xff]
        %v457 = vld [vmem:[%s389 + $0x38] sm:$0xff]
        loop: start=0, step=1, limit=2
        $region81: #{transformer_forward.1} parent=59 // loop_pre_header
          _
        $region82: #{transformer_forward.1} parent=59 // loop_header
          %s459 = sphi 0, %s463
          %p460 = scmp.ge.s32.totalorder %s459, 2
          %v464 = vphi %v450, %v1539
          %v465 = vphi %v451, %v1540
          %v466 = vphi %v452, %v1541
          %v467 = vphi %v453, %v1542
          %v468 = vphi %v454, %v1543
          %v469 = vphi %v455, %v1544
          %v470 = vphi %v456, %v1545
          %v471 = vphi %v457, %v1546
        $region83: #{transformer_forward.1} parent=59 // loop_header_branch
          %462 = sbr.rel (%p460) target = $region87
        $region84: #{transformer_forward.1} parent=59 // loop_body
          %v472 = vpack.c.bf16 %v465, %v464
          %v473 = vpack.c.bf16 %v467, %v466
          %v474 = vpack.c.bf16 %v469, %v468
          %v475 = vpack.c.bf16 %v471, %v470
          %s476 = smul.u32 %s459, 4
          %s477 = smul.addr %s476, 4
          %s478 = scalar_lea.vmem %s1, %s477
          %v479 = vld [vmem:[%s478] sm:$0xf]
          %v480 = vld [vmem:[%s478 + $0x4] sm:$0xf]
          %v481 = vld [vmem:[%s478 + $0x8] sm:$0xf]
          %v482 = vld [vmem:[%s478 + $0xc] sm:$0xf]
          %s483 = scalar_lea.vmem %s2, %s459
          %v484 = vld [vmem:[%s483] sm:$0x1]
          %v486 = vperm.slane %v484, 0
          %v492 = vunpack.c.l.b16 %v479
          %v493 = vunpack.c.l.b16 %v480
          %v494 = vunpack.c.l.b16 %v481
          %v495 = vunpack.c.l.b16 %v482
          %v496 = vpack.c.b16 %v493, %v492
          %v497 = vpack.c.b16 %v495, %v494
          %vm500 = vcmask 261120
          %v502 = vsel %vm500, %v472, 0
          %v505 = vsel %vm500, %v473, 0
          %v508 = vsel %vm500, %v474, 0
          %v511 = vsel %vm500, %v475, 0
          %513 = vmatpush.bf16.msra.mxu0 0
          %514 = vmatpush.bf16.msra.mxu0 0
          %515 = vmatpush.bf16.msra.mxu0 0
          %516 = vmatpush.bf16.msra.mxu0 0
          %517 = vmatpush.bf16.msra.mxu0 0
          %518 = vmatpush.bf16.msra.mxu0 0
          %519 = vmatpush.bf16.msra.mxu0 %v497
          %520 = vmatpush.bf16.msra.mxu0 %v496
          %521 = vmatmul.bf16.gmra.mxu0 %v502
          %v522 = vpop.f32.mrf.mxu0
          %v523 = vadd.f32 %v486, %v522
          %v524 = vpop.f32.mrf.mxu0
          %v525 = vadd.f32 %v486, %v524
          %526 = vmatmul.bf16.gmra.mxu0 %v505
          %v527 = vpop.f32.mrf.mxu0
          %v528 = vadd.f32 %v486, %v527
          %v529 = vpop.f32.mrf.mxu0
          %v530 = vadd.f32 %v486, %v529
          %531 = vmatmul.bf16.gmra.mxu0 %v508
          %v532 = vpop.f32.mrf.mxu0
          %v533 = vadd.f32 %v486, %v532
          %v534 = vpop.f32.mrf.mxu0
          %v535 = vadd.f32 %v486, %v534
          %536 = vmatmul.bf16.gmra.mxu0 %v511
          %v537 = vpop.f32.mrf.mxu0
          %v538 = vadd.f32 %v486, %v537
          %v539 = vpop.f32.mrf.mxu0
          %v540 = vadd.f32 %v486, %v539
          %541 = vdwg.mxu0
          %s542 = smul.addr %s476, 4
          %s543 = scalar_lea.vmem %s3, %s542
          %v544 = vld [vmem:[%s543] sm:$0xf]
          %v545 = vld [vmem:[%s543 + $0x4] sm:$0xf]
          %v546 = vld [vmem:[%s543 + $0x8] sm:$0xf]
          %v547 = vld [vmem:[%s543 + $0xc] sm:$0xf]
          %v548 = vunpack.c.l.bf16 %v544
          %v549 = vunpack.c.l.bf16 %v545
          %v550 = vunpack.c.l.bf16 %v546
          %v551 = vunpack.c.l.bf16 %v547
          %v552 = vpack.c.bf16 %v523, %v523
          %v553 = vpack.c.bf16 %v525, %v525
          %v554 = vpack.c.bf16 %v528, %v528
          %v555 = vpack.c.bf16 %v530, %v530
          %v556 = vpack.c.bf16 %v533, %v533
          %v557 = vpack.c.bf16 %v535, %v535
          %v558 = vpack.c.bf16 %v538, %v538
          %v559 = vpack.c.bf16 %v540, %v540
          %v562 = vunpack.c.l.b16 %v552
          %v563 = vunpack.c.l.b16 %v553
          %v564 = vpack.c.b16 %v563, %v562
          %565 = vrot.lane.b32.xlu0 %v564, 96
          %v566 = vpop.permute.xlu0 %565
          %vm567 = vcmask 130048
          %v569 = vsel %vm567, %v564, 0
          %v572 = vsel %vm567, %v566, 0
          %574 = vmatpush.bf16.xpose.msra.mxu0 0
          %575 = vmatpush.bf16.xpose.msra.mxu0 0
          %576 = vmatpush.bf16.xpose.msra.mxu0 0
          %577 = vmatpush.bf16.xpose.msra.mxu0 0
          %578 = vmatpush.bf16.xpose.msra.mxu0 0
          %579 = vmatpush.bf16.xpose.msra.mxu0 0
          %580 = vmatpush.bf16.xpose.msra.mxu0 0
          %581 = vmatpush.bf16.xpose.msra.mxu0 %v572
          %582 = vmatmul.bf16.gmra.mxu0 %v569
          %v583 = vpop.f32.mrf.mxu0
          %v584 = vadd.f32 %v548, %v583
          %v585 = vpop.f32.mrf.mxu0
          %v586 = vadd.f32 %v549, %v585
          %587 = vdwg.mxu0
          %v590 = vunpack.c.l.b16 %v554
          %v591 = vunpack.c.l.b16 %v555
          %v592 = vpack.c.b16 %v591, %v590
          %593 = vrot.lane.b32.xlu0 %v592, 96
          %v594 = vpop.permute.xlu0 %593
          %v596 = vsel %vm567, %v592, 0
          %v599 = vsel %vm567, %v594, 0
          %601 = vmatpush.bf16.xpose.msra.mxu0 0
          %602 = vmatpush.bf16.xpose.msra.mxu0 0
          %603 = vmatpush.bf16.xpose.msra.mxu0 0
          %604 = vmatpush.bf16.xpose.msra.mxu0 0
          %605 = vmatpush.bf16.xpose.msra.mxu0 0
          %606 = vmatpush.bf16.xpose.msra.mxu0 0
          %607 = vmatpush.bf16.xpose.msra.mxu0 0
          %608 = vmatpush.bf16.xpose.msra.mxu0 %v599
          %609 = vmatmul.bf16.gmra.mxu0 %v596
          %v610 = vpop.f32.mrf.mxu0
          %v611 = vadd.f32 %v548, %v610
          %v612 = vpop.f32.mrf.mxu0
          %v613 = vadd.f32 %v549, %v612
          %614 = vdwg.mxu0
          %v617 = vunpack.c.l.b16 %v556
          %v618 = vunpack.c.l.b16 %v557
          %v619 = vpack.c.b16 %v618, %v617
          %620 = vrot.lane.b32.xlu0 %v619, 96
          %v621 = vpop.permute.xlu0 %620
          %v623 = vsel %vm567, %v619, 0
          %v626 = vsel %vm567, %v621, 0
          %628 = vmatpush.bf16.xpose.msra.mxu0 0
          %629 = vmatpush.bf16.xpose.msra.mxu0 0
          %630 = vmatpush.bf16.xpose.msra.mxu0 0
          %631 = vmatpush.bf16.xpose.msra.mxu0 0
          %632 = vmatpush.bf16.xpose.msra.mxu0 0
          %633 = vmatpush.bf16.xpose.msra.mxu0 0
          %634 = vmatpush.bf16.xpose.msra.mxu0 0
          %635 = vmatpush.bf16.xpose.msra.mxu0 %v626
          %636 = vmatmul.bf16.gmra.mxu0 %v623
          %v637 = vpop.f32.mrf.mxu0
          %v638 = vadd.f32 %v548, %v637
          %v639 = vpop.f32.mrf.mxu0
          %v640 = vadd.f32 %v549, %v639
          %641 = vdwg.mxu0
          %v644 = vunpack.c.l.b16 %v558
          %v645 = vunpack.c.l.b16 %v559
          %v646 = vpack.c.b16 %v645, %v644
          %647 = vrot.lane.b32.xlu0 %v646, 96
          %v648 = vpop.permute.xlu0 %647
          %v650 = vsel %vm567, %v646, 0
          %v653 = vsel %vm567, %v648, 0
          %655 = vmatpush.bf16.xpose.msra.mxu0 0
          %656 = vmatpush.bf16.xpose.msra.mxu0 0
          %657 = vmatpush.bf16.xpose.msra.mxu0 0
          %658 = vmatpush.bf16.xpose.msra.mxu0 0
          %659 = vmatpush.bf16.xpose.msra.mxu0 0
          %660 = vmatpush.bf16.xpose.msra.mxu0 0
          %661 = vmatpush.bf16.xpose.msra.mxu0 0
          %662 = vmatpush.bf16.xpose.msra.mxu0 %v653
          %663 = vmatmul.bf16.gmra.mxu0 %v650
          %v664 = vpop.f32.mrf.mxu0
          %v665 = vadd.f32 %v548, %v664
          %v666 = vpop.f32.mrf.mxu0
          %v667 = vadd.f32 %v549, %v666
          %668 = vdwg.mxu0
          %v669 = vsel %vm567, %v584, -inf
          %670 = vmax.xlane.f32.xlu0 %v669
          %v671 = vpop.xlane.xlu0 %670
          %v672 = vsel %vm567, %v586, -inf
          %673 = vmax.xlane.f32.xlu0 %v672
          %v674 = vpop.xlane.xlu0 %673
          %v675 = vsel %vm567, %v611, -inf
          %676 = vmax.xlane.f32.xlu0 %v675
          %v677 = vpop.xlane.xlu0 %676
          %v678 = vsel %vm567, %v613, -inf
          %679 = vmax.xlane.f32.xlu0 %v678
          %v680 = vpop.xlane.xlu0 %679
          %v681 = vsel %vm567, %v638, -inf
          %682 = vmax.xlane.f32.xlu0 %v681
          %v683 = vpop.xlane.xlu0 %682
          %v684 = vsel %vm567, %v640, -inf
          %685 = vmax.xlane.f32.xlu0 %v684
          %v686 = vpop.xlane.xlu0 %685
          %v687 = vsel %vm567, %v665, -inf
          %688 = vmax.xlane.f32.xlu0 %v687
          %v689 = vpop.xlane.xlu0 %688
          %v690 = vsel %vm567, %v667, -inf
          %691 = vmax.xlane.f32.xlu0 %v690
          %v692 = vpop.xlane.xlu0 %691
          %v693 = vsub.f32 %v584, %v671
          %v694 = vsub.f32 %v586, %v674
          %v695 = vsub.f32 %v611, %v677
          %v696 = vsub.f32 %v613, %v680
          %v697 = vsub.f32 %v638, %v683
          %v698 = vsub.f32 %v640, %v686
          %v699 = vsub.f32 %v665, %v689
          %v700 = vsub.f32 %v667, %v692
          %v701 = vmul.f32 %v693, 1.442695
          %v702 = vpow.pop %v701
          %v703 = vmul.f32 %v694, 1.442695
          %v704 = vpow.pop %v703
          %v705 = vmul.f32 %v695, 1.442695
          %v706 = vpow.pop %v705
          %v707 = vmul.f32 %v696, 1.442695
          %v708 = vpow.pop %v707
          %v709 = vmul.f32 %v697, 1.442695
          %v710 = vpow.pop %v709
          %v711 = vmul.f32 %v698, 1.442695
          %v712 = vpow.pop %v711
          %v713 = vmul.f32 %v699, 1.442695
          %v714 = vpow.pop %v713
          %v715 = vmul.f32 %v700, 1.442695
          %v716 = vpow.pop %v715
          %v717 = vsel %vm567, %v702, 0.0
          %718 = vadd.xlane.f32.xlu0 %v717
          %v719 = vpop.xlane.xlu0 %718
          %v720 = vsel %vm567, %v704, 0.0
          %721 = vadd.xlane.f32.xlu0 %v720
          %v722 = vpop.xlane.xlu0 %721
          %v723 = vsel %vm567, %v706, 0.0
          %724 = vadd.xlane.f32.xlu0 %v723
          %v725 = vpop.xlane.xlu0 %724
          %v726 = vsel %vm567, %v708, 0.0
          %727 = vadd.xlane.f32.xlu0 %v726
          %v728 = vpop.xlane.xlu0 %727
          %v729 = vsel %vm567, %v710, 0.0
          %730 = vadd.xlane.f32.xlu0 %v729
          %v731 = vpop.xlane.xlu0 %730
          %v732 = vsel %vm567, %v712, 0.0
          %733 = vadd.xlane.f32.xlu0 %v732
          %v734 = vpop.xlane.xlu0 %733
          %v735 = vsel %vm567, %v714, 0.0
          %736 = vadd.xlane.f32.xlu0 %v735
          %v737 = vpop.xlane.xlu0 %736
          %v738 = vsel %vm567, %v716, 0.0
          %739 = vadd.xlane.f32.xlu0 %v738
          %v740 = vpop.xlane.xlu0 %739
          %v741 = vrcp.pop %v719
          %v742 = vrcp.pop %v722
          %v743 = vrcp.pop %v725
          %v744 = vrcp.pop %v728
          %v745 = vrcp.pop %v731
          %v746 = vrcp.pop %v734
          %v747 = vrcp.pop %v737
          %v748 = vrcp.pop %v740
          %v749 = vmul.f32 %v702, %v741
          %v750 = vmul.f32 %v704, %v742
          %v751 = vmul.f32 %v706, %v743
          %v752 = vmul.f32 %v708, %v744
          %v753 = vmul.f32 %v710, %v745
          %v754 = vmul.f32 %v712, %v746
          %v755 = vmul.f32 %v714, %v747
          %v756 = vmul.f32 %v716, %v748
          %v757 = vpack.c.bf16 %v749, %v749
          %v758 = vpack.c.bf16 %v750, %v750
          %v759 = vpack.c.bf16 %v751, %v751
          %v760 = vpack.c.bf16 %v752, %v752
          %v761 = vpack.c.bf16 %v753, %v753
          %v762 = vpack.c.bf16 %v754, %v754
          %v763 = vpack.c.bf16 %v755, %v755
          %v764 = vpack.c.bf16 %v756, %v756
          %v767 = vunpack.c.l.b16 %v757
          %v768 = vunpack.c.l.b16 %v758
          %v769 = vpack.c.b16 %v768, %v767
          %770 = vrot.lane.b32.xlu0 %v564, 64
          %v771 = vpop.permute.xlu0 %770
          %v774 = vsel %vm567, %v769, 0
          %776 = vmatpush.bf16.msra.mxu0 0
          %777 = vmatpush.bf16.msra.mxu0 0
          %778 = vmatpush.bf16.msra.mxu0 0
          %779 = vmatpush.bf16.msra.mxu0 0
          %780 = vmatpush.bf16.msra.mxu0 0
          %781 = vmatpush.bf16.msra.mxu0 0
          %782 = vmatpush.bf16.msra.mxu0 0
          %783 = vmatpush.bf16.msra.mxu0 %v771
          %784 = vmatmul.bf16.gmra.mxu0 %v774
          %v785 = vpop.f32.mrf.mxu0
          %v786 = vadd.f32 0.0, %v785
          %v787 = vpop.f32.mrf.mxu0
          %v788 = vadd.f32 0.0, %v787
          %789 = vdwg.mxu0
          %v792 = vunpack.c.l.b16 %v759
          %v793 = vunpack.c.l.b16 %v760
          %v794 = vpack.c.b16 %v793, %v792
          %795 = vrot.lane.b32.xlu0 %v592, 64
          %v796 = vpop.permute.xlu0 %795
          %v799 = vsel %vm567, %v794, 0
          %801 = vmatpush.bf16.msra.mxu0 0
          %802 = vmatpush.bf16.msra.mxu0 0
          %803 = vmatpush.bf16.msra.mxu0 0
          %804 = vmatpush.bf16.msra.mxu0 0
          %805 = vmatpush.bf16.msra.mxu0 0
          %806 = vmatpush.bf16.msra.mxu0 0
          %807 = vmatpush.bf16.msra.mxu0 0
          %808 = vmatpush.bf16.msra.mxu0 %v796
          %809 = vmatmul.bf16.gmra.mxu0 %v799
          %v810 = vpop.f32.mrf.mxu0
          %v811 = vadd.f32 0.0, %v810
          %v812 = vpop.f32.mrf.mxu0
          %v813 = vadd.f32 0.0, %v812
          %814 = vdwg.mxu0
          %v817 = vunpack.c.l.b16 %v761
          %v818 = vunpack.c.l.b16 %v762
          %v819 = vpack.c.b16 %v818, %v817
          %820 = vrot.lane.b32.xlu0 %v619, 64
          %v821 = vpop.permute.xlu0 %820
          %v824 = vsel %vm567, %v819, 0
          %826 = vmatpush.bf16.msra.mxu0 0
          %827 = vmatpush.bf16.msra.mxu0 0
          %828 = vmatpush.bf16.msra.mxu0 0
          %829 = vmatpush.bf16.msra.mxu0 0
          %830 = vmatpush.bf16.msra.mxu0 0
          %831 = vmatpush.bf16.msra.mxu0 0
          %832 = vmatpush.bf16.msra.mxu0 0
          %833 = vmatpush.bf16.msra.mxu0 %v821
          %834 = vmatmul.bf16.gmra.mxu0 %v824
          %v835 = vpop.f32.mrf.mxu0
          %v836 = vadd.f32 0.0, %v835
          %v837 = vpop.f32.mrf.mxu0
          %v838 = vadd.f32 0.0, %v837
          %839 = vdwg.mxu0
          %v842 = vunpack.c.l.b16 %v763
          %v843 = vunpack.c.l.b16 %v764
          %v844 = vpack.c.b16 %v843, %v842
          %845 = vrot.lane.b32.xlu0 %v646, 64
          %v846 = vpop.permute.xlu0 %845
          %v849 = vsel %vm567, %v844, 0
          %851 = vmatpush.bf16.msra.mxu0 0
          %852 = vmatpush.bf16.msra.mxu0 0
          %853 = vmatpush.bf16.msra.mxu0 0
          %854 = vmatpush.bf16.msra.mxu0 0
          %855 = vmatpush.bf16.msra.mxu0 0
          %856 = vmatpush.bf16.msra.mxu0 0
          %857 = vmatpush.bf16.msra.mxu0 0
          %858 = vmatpush.bf16.msra.mxu0 %v846
          %859 = vmatmul.bf16.gmra.mxu0 %v849
          %v860 = vpop.f32.mrf.mxu0
          %v861 = vadd.f32 0.0, %v860
          %v862 = vpop.f32.mrf.mxu0
          %v863 = vadd.f32 0.0, %v862
          %864 = vdwg.mxu0
          %865 = vrot.lane.b32.xlu0 %v564, 112
          %v866 = vpop.permute.xlu0 %865
          %867 = vrot.lane.b32.xlu0 %v564, 80
          %v868 = vpop.permute.xlu0 %867
          %v870 = vsel %vm567, %v866, 0
          %v873 = vsel %vm567, %v868, 0
          %875 = vmatpush.bf16.xpose.msra.mxu0 0
          %876 = vmatpush.bf16.xpose.msra.mxu0 0
          %877 = vmatpush.bf16.xpose.msra.mxu0 0
          %878 = vmatpush.bf16.xpose.msra.mxu0 0
          %879 = vmatpush.bf16.xpose.msra.mxu0 0
          %880 = vmatpush.bf16.xpose.msra.mxu0 0
          %881 = vmatpush.bf16.xpose.msra.mxu0 0
          %882 = vmatpush.bf16.xpose.msra.mxu0 %v873
          %883 = vmatmul.bf16.gmra.mxu0 %v870
          %v884 = vpop.f32.mrf.mxu0
          %v885 = vadd.f32 %v550, %v884
          %v886 = vpop.f32.mrf.mxu0
          %v887 = vadd.f32 %v551, %v886
          %888 = vdwg.mxu0
          %889 = vrot.lane.b32.xlu0 %v592, 112
          %v890 = vpop.permute.xlu0 %889
          %891 = vrot.lane.b32.xlu0 %v592, 80
          %v892 = vpop.permute.xlu0 %891
          %v894 = vsel %vm567, %v890, 0
          %v897 = vsel %vm567, %v892, 0
          %899 = vmatpush.bf16.xpose.msra.mxu0 0
          %900 = vmatpush.bf16.xpose.msra.mxu0 0
          %901 = vmatpush.bf16.xpose.msra.mxu0 0
          %902 = vmatpush.bf16.xpose.msra.mxu0 0
          %903 = vmatpush.bf16.xpose.msra.mxu0 0
          %904 = vmatpush.bf16.xpose.msra.mxu0 0
          %905 = vmatpush.bf16.xpose.msra.mxu0 0
          %906 = vmatpush.bf16.xpose.msra.mxu0 %v897
          %907 = vmatmul.bf16.gmra.mxu0 %v894
          %v908 = vpop.f32.mrf.mxu0
          %v909 = vadd.f32 %v550, %v908
          %v910 = vpop.f32.mrf.mxu0
          %v911 = vadd.f32 %v551, %v910
          %912 = vdwg.mxu0
          %913 = vrot.lane.b32.xlu0 %v619, 112
          %v914 = vpop.permute.xlu0 %913
          %915 = vrot.lane.b32.xlu0 %v619, 80
          %v916 = vpop.permute.xlu0 %915
          %v918 = vsel %vm567, %v914, 0
          %v921 = vsel %vm567, %v916, 0
          %923 = vmatpush.bf16.xpose.msra.mxu0 0
          %924 = vmatpush.bf16.xpose.msra.mxu0 0
          %925 = vmatpush.bf16.xpose.msra.mxu0 0
          %926 = vmatpush.bf16.xpose.msra.mxu0 0
          %927 = vmatpush.bf16.xpose.msra.mxu0 0
          %928 = vmatpush.bf16.xpose.msra.mxu0 0
          %929 = vmatpush.bf16.xpose.msra.mxu0 0
          %930 = vmatpush.bf16.xpose.msra.mxu0 %v921
          %931 = vmatmul.bf16.gmra.mxu0 %v918
          %v932 = vpop.f32.mrf.mxu0
          %v933 = vadd.f32 %v550, %v932
          %v934 = vpop.f32.mrf.mxu0
          %v935 = vadd.f32 %v551, %v934
          %936 = vdwg.mxu0
          %937 = vrot.lane.b32.xlu0 %v646, 112
          %v938 = vpop.permute.xlu0 %937
          %939 = vrot.lane.b32.xlu0 %v646, 80
          %v940 = vpop.permute.xlu0 %939
          %v942 = vsel %vm567, %v938, 0
          %v945 = vsel %vm567, %v940, 0
          %947 = vmatpush.bf16.xpose.msra.mxu0 0
          %948 = vmatpush.bf16.xpose.msra.mxu0 0
          %949 = vmatpush.bf16.xpose.msra.mxu0 0
          %950 = vmatpush.bf16.xpose.msra.mxu0 0
          %951 = vmatpush.bf16.xpose.msra.mxu0 0
          %952 = vmatpush.bf16.xpose.msra.mxu0 0
          %953 = vmatpush.bf16.xpose.msra.mxu0 0
          %954 = vmatpush.bf16.xpose.msra.mxu0 %v945
          %955 = vmatmul.bf16.gmra.mxu0 %v942
          %v956 = vpop.f32.mrf.mxu0
          %v957 = vadd.f32 %v550, %v956
          %v958 = vpop.f32.mrf.mxu0
          %v959 = vadd.f32 %v551, %v958
          %960 = vdwg.mxu0
          %v961 = vsel %vm567, %v885, -inf
          %962 = vmax.xlane.f32.xlu0 %v961
          %v963 = vpop.xlane.xlu0 %962
          %v964 = vsel %vm567, %v887, -inf
          %965 = vmax.xlane.f32.xlu0 %v964
          %v966 = vpop.xlane.xlu0 %965
          %v967 = vsel %vm567, %v909, -inf
          %968 = vmax.xlane.f32.xlu0 %v967
          %v969 = vpop.xlane.xlu0 %968
          %v970 = vsel %vm567, %v911, -inf
          %971 = vmax.xlane.f32.xlu0 %v970
          %v972 = vpop.xlane.xlu0 %971
          %v973 = vsel %vm567, %v933, -inf
          %974 = vmax.xlane.f32.xlu0 %v973
          %v975 = vpop.xlane.xlu0 %974
          %v976 = vsel %vm567, %v935, -inf
          %977 = vmax.xlane.f32.xlu0 %v976
          %v978 = vpop.xlane.xlu0 %977
          %v979 = vsel %vm567, %v957, -inf
          %980 = vmax.xlane.f32.xlu0 %v979
          %v981 = vpop.xlane.xlu0 %980
          %v982 = vsel %vm567, %v959, -inf
          %983 = vmax.xlane.f32.xlu0 %v982
          %v984 = vpop.xlane.xlu0 %983
          %v985 = vsub.f32 %v885, %v963
          %v986 = vsub.f32 %v887, %v966
          %v987 = vsub.f32 %v909, %v969
          %v988 = vsub.f32 %v911, %v972
          %v989 = vsub.f32 %v933, %v975
          %v990 = vsub.f32 %v935, %v978
          %v991 = vsub.f32 %v957, %v981
          %v992 = vsub.f32 %v959, %v984
          %v993 = vmul.f32 %v985, 1.442695
          %v994 = vpow.pop %v993
          %v995 = vmul.f32 %v986, 1.442695
          %v996 = vpow.pop %v995
          %v997 = vmul.f32 %v987, 1.442695
          %v998 = vpow.pop %v997
          %v999 = vmul.f32 %v988, 1.442695
          %v1000 = vpow.pop %v999
          %v1001 = vmul.f32 %v989, 1.442695
          %v1002 = vpow.pop %v1001
          %v1003 = vmul.f32 %v990, 1.442695
          %v1004 = vpow.pop %v1003
          %v1005 = vmul.f32 %v991, 1.442695
          %v1006 = vpow.pop %v1005
          %v1007 = vmul.f32 %v992, 1.442695
          %v1008 = vpow.pop %v1007
          %v1009 = vsel %vm567, %v994, 0.0
          %1010 = vadd.xlane.f32.xlu0 %v1009
          %v1011 = vpop.xlane.xlu0 %1010
          %v1012 = vsel %vm567, %v996, 0.0
          %1013 = vadd.xlane.f32.xlu0 %v1012
          %v1014 = vpop.xlane.xlu0 %1013
          %v1015 = vsel %vm567, %v998, 0.0
          %1016 = vadd.xlane.f32.xlu0 %v1015
          %v1017 = vpop.xlane.xlu0 %1016
          %v1018 = vsel %vm567, %v1000, 0.0
          %1019 = vadd.xlane.f32.xlu0 %v1018
          %v1020 = vpop.xlane.xlu0 %1019
          %v1021 = vsel %vm567, %v1002, 0.0
          %1022 = vadd.xlane.f32.xlu0 %v1021
          %v1023 = vpop.xlane.xlu0 %1022
          %v1024 = vsel %vm567, %v1004, 0.0
          %1025 = vadd.xlane.f32.xlu0 %v1024
          %v1026 = vpop.xlane.xlu0 %1025
          %v1027 = vsel %vm567, %v1006, 0.0
          %1028 = vadd.xlane.f32.xlu0 %v1027
          %v1029 = vpop.xlane.xlu0 %1028
          %v1030 = vsel %vm567, %v1008, 0.0
          %1031 = vadd.xlane.f32.xlu0 %v1030
          %v1032 = vpop.xlane.xlu0 %1031
          %v1033 = vrcp.pop %v1011
          %v1034 = vrcp.pop %v1014
          %v1035 = vrcp.pop %v1017
          %v1036 = vrcp.pop %v1020
          %v1037 = vrcp.pop %v1023
          %v1038 = vrcp.pop %v1026
          %v1039 = vrcp.pop %v1029
          %v1040 = vrcp.pop %v1032
          %v1041 = vmul.f32 %v994, %v1033
          %v1042 = vmul.f32 %v996, %v1034
          %v1043 = vmul.f32 %v998, %v1035
          %v1044 = vmul.f32 %v1000, %v1036
          %v1045 = vmul.f32 %v1002, %v1037
          %v1046 = vmul.f32 %v1004, %v1038
          %v1047 = vmul.f32 %v1006, %v1039
          %v1048 = vmul.f32 %v1008, %v1040
          %v1049 = vpack.c.bf16 %v1041, %v1041
          %v1050 = vpack.c.bf16 %v1042, %v1042
          %v1051 = vpack.c.bf16 %v1043, %v1043
          %v1052 = vpack.c.bf16 %v1044, %v1044
          %v1053 = vpack.c.bf16 %v1045, %v1045
          %v1054 = vpack.c.bf16 %v1046, %v1046
          %v1055 = vpack.c.bf16 %v1047, %v1047
          %v1056 = vpack.c.bf16 %v1048, %v1048
          %v1059 = vunpack.c.l.b16 %v1049
          %v1060 = vunpack.c.l.b16 %v1050
          %v1061 = vpack.c.b16 %v1060, %v1059
          %1062 = vrot.lane.b32.xlu0 %v564, 48
          %v1063 = vpop.permute.xlu0 %1062
          %v1066 = vsel %vm567, %v1061, 0
          %1068 = vmatpush.bf16.msra.mxu0 0
          %1069 = vmatpush.bf16.msra.mxu0 0
          %1070 = vmatpush.bf16.msra.mxu0 0
          %1071 = vmatpush.bf16.msra.mxu0 0
          %1072 = vmatpush.bf16.msra.mxu0 0
          %1073 = vmatpush.bf16.msra.mxu0 0
          %1074 = vmatpush.bf16.msra.mxu0 0
          %1075 = vmatpush.bf16.msra.mxu0 %v1063
          %1076 = vmatmul.bf16.gmra.mxu0 %v1066
          %v1077 = vpop.f32.mrf.mxu0
          %v1078 = vadd.f32 0.0, %v1077
          %v1079 = vpop.f32.mrf.mxu0
          %v1080 = vadd.f32 0.0, %v1079
          %1081 = vdwg.mxu0
          %v1084 = vunpack.c.l.b16 %v1051
          %v1085 = vunpack.c.l.b16 %v1052
          %v1086 = vpack.c.b16 %v1085, %v1084
          %1087 = vrot.lane.b32.xlu0 %v592, 48
          %v1088 = vpop.permute.xlu0 %1087
          %v1091 = vsel %vm567, %v1086, 0
          %1093 = vmatpush.bf16.msra.mxu0 0
          %1094 = vmatpush.bf16.msra.mxu0 0
          %1095 = vmatpush.bf16.msra.mxu0 0
          %1096 = vmatpush.bf16.msra.mxu0 0
          %1097 = vmatpush.bf16.msra.mxu0 0
          %1098 = vmatpush.bf16.msra.mxu0 0
          %1099 = vmatpush.bf16.msra.mxu0 0
          %1100 = vmatpush.bf16.msra.mxu0 %v1088
          %1101 = vmatmul.bf16.gmra.mxu0 %v1091
          %v1102 = vpop.f32.mrf.mxu0
          %v1103 = vadd.f32 0.0, %v1102
          %v1104 = vpop.f32.mrf.mxu0
          %v1105 = vadd.f32 0.0, %v1104
          %1106 = vdwg.mxu0
          %v1109 = vunpack.c.l.b16 %v1053
          %v1110 = vunpack.c.l.b16 %v1054
          %v1111 = vpack.c.b16 %v1110, %v1109
          %1112 = vrot.lane.b32.xlu0 %v619, 48
          %v1113 = vpop.permute.xlu0 %1112
          %v1116 = vsel %vm567, %v1111, 0
          %1118 = vmatpush.bf16.msra.mxu0 0
          %1119 = vmatpush.bf16.msra.mxu0 0
          %1120 = vmatpush.bf16.msra.mxu0 0
          %1121 = vmatpush.bf16.msra.mxu0 0
          %1122 = vmatpush.bf16.msra.mxu0 0
          %1123 = vmatpush.bf16.msra.mxu0 0
          %1124 = vmatpush.bf16.msra.mxu0 0
          %1125 = vmatpush.bf16.msra.mxu0 %v1113
          %1126 = vmatmul.bf16.gmra.mxu0 %v1116
          %v1127 = vpop.f32.mrf.mxu0
          %v1128 = vadd.f32 0.0, %v1127
          %v1129 = vpop.f32.mrf.mxu0
          %v1130 = vadd.f32 0.0, %v1129
          %1131 = vdwg.mxu0
          %v1134 = vunpack.c.l.b16 %v1055
          %v1135 = vunpack.c.l.b16 %v1056
          %v1136 = vpack.c.b16 %v1135, %v1134
          %1137 = vrot.lane.b32.xlu0 %v646, 48
          %v1138 = vpop.permute.xlu0 %1137
          %v1141 = vsel %vm567, %v1136, 0
          %1143 = vmatpush.bf16.msra.mxu0 0
          %1144 = vmatpush.bf16.msra.mxu0 0
          %1145 = vmatpush.bf16.msra.mxu0 0
          %1146 = vmatpush.bf16.msra.mxu0 0
          %1147 = vmatpush.bf16.msra.mxu0 0
          %1148 = vmatpush.bf16.msra.mxu0 0
          %1149 = vmatpush.bf16.msra.mxu0 0
          %1150 = vmatpush.bf16.msra.mxu0 %v1138
          %1151 = vmatmul.bf16.gmra.mxu0 %v1141
          %v1152 = vpop.f32.mrf.mxu0
          %v1153 = vadd.f32 0.0, %v1152
          %v1154 = vpop.f32.mrf.mxu0
          %v1155 = vadd.f32 0.0, %v1154
          %1156 = vdwg.mxu0
          %1165 = vrot.lane.b32.xlu0 %v1078, 16
          %v1166 = vpop.permute.xlu0 %1165
          %1167 = vrot.lane.b32.xlu0 %v1080, 16
          %v1168 = vpop.permute.xlu0 %1167
          %1169 = vrot.lane.b32.xlu0 %v1103, 16
          %v1170 = vpop.permute.xlu0 %1169
          %1171 = vrot.lane.b32.xlu0 %v1105, 16
          %v1172 = vpop.permute.xlu0 %1171
          %1173 = vrot.lane.b32.xlu0 %v1128, 16
          %v1174 = vpop.permute.xlu0 %1173
          %1175 = vrot.lane.b32.xlu0 %v1130, 16
          %v1176 = vpop.permute.xlu0 %1175
          %1177 = vrot.lane.b32.xlu0 %v1153, 16
          %v1178 = vpop.permute.xlu0 %1177
          %1179 = vrot.lane.b32.xlu0 %v1155, 16
          %v1180 = vpop.permute.xlu0 %1179
          %v1189 = vsel %vm567, %v786, %v1166
          %v1190 = vsel %vm567, %v788, %v1168
          %v1191 = vsel %vm567, %v811, %v1170
          %v1192 = vsel %vm567, %v813, %v1172
          %v1193 = vsel %vm567, %v836, %v1174
          %v1194 = vsel %vm567, %v838, %v1176
          %v1195 = vsel %vm567, %v861, %v1178
          %v1196 = vsel %vm567, %v863, %v1180
          %v1197 = vmul.f32 %v1189, %v1189
          %v1198 = vmul.f32 %v1190, %v1190
          %v1199 = vmul.f32 %v1191, %v1191
          %v1200 = vmul.f32 %v1192, %v1192
          %v1201 = vmul.f32 %v1193, %v1193
          %v1202 = vmul.f32 %v1194, %v1194
          %v1203 = vmul.f32 %v1195, %v1195
          %v1204 = vmul.f32 %v1196, %v1196
          %v1205 = vmul.f32 %v1189, %v1197
          %v1206 = vmul.f32 %v1190, %v1198
          %v1207 = vmul.f32 %v1191, %v1199
          %v1208 = vmul.f32 %v1192, %v1200
          %v1209 = vmul.f32 %v1193, %v1201
          %v1210 = vmul.f32 %v1194, %v1202
          %v1211 = vmul.f32 %v1195, %v1203
          %v1212 = vmul.f32 %v1196, %v1204
          %v1213 = vmul.f32 %v1205, 0.044715
          %v1214 = vmul.f32 %v1206, 0.044715
          %v1215 = vmul.f32 %v1207, 0.044715
          %v1216 = vmul.f32 %v1208, 0.044715
          %v1217 = vmul.f32 %v1209, 0.044715
          %v1218 = vmul.f32 %v1210, 0.044715
          %v1219 = vmul.f32 %v1211, 0.044715
          %v1220 = vmul.f32 %v1212, 0.044715
          %v1221 = vadd.f32 %v1189, %v1213
          %v1222 = vadd.f32 %v1190, %v1214
          %v1223 = vadd.f32 %v1191, %v1215
          %v1224 = vadd.f32 %v1192, %v1216
          %v1225 = vadd.f32 %v1193, %v1217
          %v1226 = vadd.f32 %v1194, %v1218
          %v1227 = vadd.f32 %v1195, %v1219
          %v1228 = vadd.f32 %v1196, %v1220
          %v1229 = vmul.f32 %v1221, 0.7978846
          %v1230 = vmul.f32 %v1222, 0.7978846
          %v1231 = vmul.f32 %v1223, 0.7978846
          %v1232 = vmul.f32 %v1224, 0.7978846
          %v1233 = vmul.f32 %v1225, 0.7978846
          %v1234 = vmul.f32 %v1226, 0.7978846
          %v1235 = vmul.f32 %v1227, 0.7978846
          %v1236 = vmul.f32 %v1228, 0.7978846
          %v1237 = vtanh.pop %v1229
          %v1238 = vtanh.pop %v1230
          %v1239 = vtanh.pop %v1231
          %v1240 = vtanh.pop %v1232
          %v1241 = vtanh.pop %v1233
          %v1242 = vtanh.pop %v1234
          %v1243 = vtanh.pop %v1235
          %v1244 = vtanh.pop %v1236
          %v1245 = vadd.f32 %v1237, 1.0
          %v1246 = vadd.f32 %v1238, 1.0
          %v1247 = vadd.f32 %v1239, 1.0
          %v1248 = vadd.f32 %v1240, 1.0
          %v1249 = vadd.f32 %v1241, 1.0
          %v1250 = vadd.f32 %v1242, 1.0
          %v1251 = vadd.f32 %v1243, 1.0
          %v1252 = vadd.f32 %v1244, 1.0
          %v1253 = vmul.f32 %v1245, 0.5
          %v1254 = vmul.f32 %v1246, 0.5
          %v1255 = vmul.f32 %v1247, 0.5
          %v1256 = vmul.f32 %v1248, 0.5
          %v1257 = vmul.f32 %v1249, 0.5
          %v1258 = vmul.f32 %v1250, 0.5
          %v1259 = vmul.f32 %v1251, 0.5
          %v1260 = vmul.f32 %v1252, 0.5
          %v1261 = vmul.f32 %v1189, %v1253
          %v1262 = vmul.f32 %v1190, %v1254
          %v1263 = vmul.f32 %v1191, %v1255
          %v1264 = vmul.f32 %v1192, %v1256
          %v1265 = vmul.f32 %v1193, %v1257
          %v1266 = vmul.f32 %v1194, %v1258
          %v1267 = vmul.f32 %v1195, %v1259
          %v1268 = vmul.f32 %v1196, %v1260
          %v1269 = vpack.c.bf16 %v1262, %v1261
          %v1270 = vpack.c.bf16 %v1264, %v1263
          %v1271 = vpack.c.bf16 %v1266, %v1265
          %v1272 = vpack.c.bf16 %v1268, %v1267
          %s1273 = smul.addr %s476, 4
          %s1274 = scalar_lea.vmem %s4, %s1273
          %v1275 = vld [vmem:[%s1274] sm:$0xf]
          %v1276 = vld [vmem:[%s1274 + $0x4] sm:$0xf]
          %v1277 = vld [vmem:[%s1274 + $0x8] sm:$0xf]
          %v1278 = vld [vmem:[%s1274 + $0xc] sm:$0xf]
          %s1279 = scalar_lea.vmem [#allocation5], %s459
          %v1280 = vld [vmem:[%s1279] sm:$0x1]
          %v1282 = vperm.slane %v1280, 0
          %v1288 = vunpack.c.l.b16 %v1275
          %v1289 = vunpack.c.l.b16 %v1276
          %v1290 = vunpack.c.l.b16 %v1277
          %v1291 = vunpack.c.l.b16 %v1278
          %v1292 = vpack.c.b16 %v1289, %v1288
          %v1293 = vpack.c.b16 %v1291, %v1290
          %v1297 = vsel %vm500, %v1269, 0
          %v1300 = vsel %vm500, %v1270, 0
          %v1303 = vsel %vm500, %v1271, 0
          %v1306 = vsel %vm500, %v1272, 0
          %1308 = vmatpush.bf16.msra.mxu0 0
          %1309 = vmatpush.bf16.msra.mxu0 0
          %1310 = vmatpush.bf16.msra.mxu0 0
          %1311 = vmatpush.bf16.msra.mxu0 0
          %1312 = vmatpush.bf16.msra.mxu0 0
          %1313 = vmatpush.bf16.msra.mxu0 0
          %1314 = vmatpush.bf16.msra.mxu0 %v1293
          %1315 = vmatpush.bf16.msra.mxu0 %v1292
          %1316 = vmatmul.bf16.gmra.mxu0 %v1297
          %v1317 = vpop.f32.mrf.mxu0
          %v1318 = vadd.f32 %v1282, %v1317
          %v1319 = vpop.f32.mrf.mxu0
          %v1320 = vadd.f32 %v1282, %v1319
          %1321 = vmatmul.bf16.gmra.mxu0 %v1300
          %v1322 = vpop.f32.mrf.mxu0
          %v1323 = vadd.f32 %v1282, %v1322
          %v1324 = vpop.f32.mrf.mxu0
          %v1325 = vadd.f32 %v1282, %v1324
          %1326 = vmatmul.bf16.gmra.mxu0 %v1303
          %v1327 = vpop.f32.mrf.mxu0
          %v1328 = vadd.f32 %v1282, %v1327
          %v1329 = vpop.f32.mrf.mxu0
          %v1330 = vadd.f32 %v1282, %v1329
          %1331 = vmatmul.bf16.gmra.mxu0 %v1306
          %v1332 = vpop.f32.mrf.mxu0
          %v1333 = vadd.f32 %v1282, %v1332
          %v1334 = vpop.f32.mrf.mxu0
          %v1335 = vadd.f32 %v1282, %v1334
          %1336 = vdwg.mxu0
          %v1337 = vadd.f32 %v1318, %v464
          %v1338 = vadd.f32 %v1320, %v465
          %v1339 = vadd.f32 %v1323, %v466
          %v1340 = vadd.f32 %v1325, %v467
          %v1341 = vadd.f32 %v1328, %v468
          %v1342 = vadd.f32 %v1330, %v469
          %v1343 = vadd.f32 %v1333, %v470
          %v1344 = vadd.f32 %v1335, %v471
          %v1345 = vpack.c.bf16 %v1338, %v1337
          %v1346 = vpack.c.bf16 %v1340, %v1339
          %v1347 = vpack.c.bf16 %v1342, %v1341
          %v1348 = vpack.c.bf16 %v1344, %v1343
          %s1349 = smul.addr %s476, 4
          %s1350 = scalar_lea.vmem [#allocation7], %s1349
          %v1351 = vld [vmem:[%s1350] sm:$0xf]
          %v1352 = vld [vmem:[%s1350 + $0x4] sm:$0xf]
          %v1353 = vld [vmem:[%s1350 + $0x8] sm:$0xf]
          %v1354 = vld [vmem:[%s1350 + $0xc] sm:$0xf]
          %s1355 = scalar_lea.vmem [#allocation8], %s459
          %v1356 = vld [vmem:[%s1355] sm:$0x1]
          %v1358 = vperm.slane %v1356, 0
          %v1364 = vunpack.c.l.b16 %v1351
          %v1365 = vunpack.c.l.b16 %v1352
          %v1366 = vunpack.c.l.b16 %v1353
          %v1367 = vunpack.c.l.b16 %v1354
          %v1368 = vpack.c.b16 %v1365, %v1364
          %v1369 = vpack.c.b16 %v1367, %v1366
          %v1373 = vsel %vm500, %v1345, 0
          %v1376 = vsel %vm500, %v1346, 0
          %v1379 = vsel %vm500, %v1347, 0
          %v1382 = vsel %vm500, %v1348, 0
          %1384 = vmatpush.bf16.msra.mxu0 0
          %1385 = vmatpush.bf16.msra.mxu0 0
          %1386 = vmatpush.bf16.msra.mxu0 0
          %1387 = vmatpush.bf16.msra.mxu0 0
          %1388 = vmatpush.bf16.msra.mxu0 0
          %1389 = vmatpush.bf16.msra.mxu0 0
          %1390 = vmatpush.bf16.msra.mxu0 %v1369
          %1391 = vmatpush.bf16.msra.mxu0 %v1368
          %1392 = vmatmul.bf16.gmra.mxu0 %v1373
          %v1393 = vpop.f32.mrf.mxu0
          %v1394 = vadd.f32 %v1358, %v1393
          %v1395 = vpop.f32.mrf.mxu0
          %v1396 = vadd.f32 %v1358, %v1395
          %1397 = vmatmul.bf16.gmra.mxu0 %v1376
          %v1398 = vpop.f32.mrf.mxu0
          %v1399 = vadd.f32 %v1358, %v1398
          %v1400 = vpop.f32.mrf.mxu0
          %v1401 = vadd.f32 %v1358, %v1400
          %1402 = vmatmul.bf16.gmra.mxu0 %v1379
          %v1403 = vpop.f32.mrf.mxu0
          %v1404 = vadd.f32 %v1358, %v1403
          %v1405 = vpop.f32.mrf.mxu0
          %v1406 = vadd.f32 %v1358, %v1405
          %1407 = vmatmul.bf16.gmra.mxu0 %v1382
          %v1408 = vpop.f32.mrf.mxu0
          %v1409 = vadd.f32 %v1358, %v1408
          %v1410 = vpop.f32.mrf.mxu0
          %v1411 = vadd.f32 %v1358, %v1410
          %1412 = vdwg.mxu0
          %v1413 = vadd.f32 %v1394, 3.0
          %v1414 = vadd.f32 %v1396, 3.0
          %v1415 = vadd.f32 %v1399, 3.0
          %v1416 = vadd.f32 %v1401, 3.0
          %v1417 = vadd.f32 %v1404, 3.0
          %v1418 = vadd.f32 %v1406, 3.0
          %v1419 = vadd.f32 %v1409, 3.0
          %v1420 = vadd.f32 %v1411, 3.0
          %v1421 = vmax.f32 %v1413, 0.0
          %v1422 = vmax.f32 %v1414, 0.0
          %v1423 = vmax.f32 %v1415, 0.0
          %v1424 = vmax.f32 %v1416, 0.0
          %v1425 = vmax.f32 %v1417, 0.0
          %v1426 = vmax.f32 %v1418, 0.0
          %v1427 = vmax.f32 %v1419, 0.0
          %v1428 = vmax.f32 %v1420, 0.0
          %v1429 = vmin.f32 %v1421, 6.0
          %v1430 = vmin.f32 %v1422, 6.0
          %v1431 = vmin.f32 %v1423, 6.0
          %v1432 = vmin.f32 %v1424, 6.0
          %v1433 = vmin.f32 %v1425, 6.0
          %v1434 = vmin.f32 %v1426, 6.0
          %v1435 = vmin.f32 %v1427, 6.0
          %v1436 = vmin.f32 %v1428, 6.0
          %v1437 = vmul.f32 %v1394, %v1429
          %v1438 = vmul.f32 %v1396, %v1430
          %v1439 = vmul.f32 %v1399, %v1431
          %v1440 = vmul.f32 %v1401, %v1432
          %v1441 = vmul.f32 %v1404, %v1433
          %v1442 = vmul.f32 %v1406, %v1434
          %v1443 = vmul.f32 %v1409, %v1435
          %v1444 = vmul.f32 %v1411, %v1436
          %v1445 = vmul.f32 %v1437, 0.16666667
          %v1446 = vmul.f32 %v1438, 0.16666667
          %v1447 = vmul.f32 %v1439, 0.16666667
          %v1448 = vmul.f32 %v1440, 0.16666667
          %v1449 = vmul.f32 %v1441, 0.16666667
          %v1450 = vmul.f32 %v1442, 0.16666667
          %v1451 = vmul.f32 %v1443, 0.16666667
          %v1452 = vmul.f32 %v1444, 0.16666667
          %v1453 = vpack.c.bf16 %v1446, %v1445
          %v1454 = vpack.c.bf16 %v1448, %v1447
          %v1455 = vpack.c.bf16 %v1450, %v1449
          %v1456 = vpack.c.bf16 %v1452, %v1451
          %s1457 = smul.u32 %s459, 8
          %s1458 = smul.addr %s1457, 4
          %s1459 = scalar_lea.vmem %s8, %s1458
          %v1460 = vld [vmem:[%s1459] sm:$0xf]
          %v1461 = vld [vmem:[%s1459 + $0x4] sm:$0xf]
          %v1462 = vld [vmem:[%s1459 + $0x8] sm:$0xf]
          %v1463 = vld [vmem:[%s1459 + $0xc] sm:$0xf]
          %v1464 = vld [vmem:[%s1459 + $0x10] sm:$0xf]
          %v1465 = vld [vmem:[%s1459 + $0x14] sm:$0xf]
          %v1466 = vld [vmem:[%s1459 + $0x18] sm:$0xf]
          %v1467 = vld [vmem:[%s1459 + $0x1c] sm:$0xf]
          %s1468 = scalar_lea.vmem [#allocation10], %s459
          %v1469 = vld [vmem:[%s1468] sm:$0x1]
          %v1471 = vperm.slane %v1469, 0
          %v1481 = vunpack.c.l.b16 %v1460
          %v1482 = vunpack.c.l.b16 %v1461
          %v1483 = vunpack.c.l.b16 %v1462
          %v1484 = vunpack.c.l.b16 %v1463
          %v1485 = vunpack.c.l.b16 %v1464
          %v1486 = vunpack.c.l.b16 %v1465
          %v1487 = vunpack.c.l.b16 %v1466
          %v1488 = vunpack.c.l.b16 %v1467
          %v1489 = vpack.c.b16 %v1482, %v1481
          %v1490 = vpack.c.b16 %v1484, %v1483
          %v1491 = vpack.c.b16 %v1486, %v1485
          %v1492 = vpack.c.b16 %v1488, %v1487
          %vm1497 = vcmask 523264
          %v1499 = vsel %vm1497, %v1453, 0
          %v1502 = vsel %vm1497, %v1454, 0
          %v1505 = vsel %vm1497, %v1455, 0
          %v1508 = vsel %vm1497, %v1456, 0
          %1510 = vmatpush.bf16.msra.mxu0 0
          %1511 = vmatpush.bf16.msra.mxu0 0
          %1512 = vmatpush.bf16.msra.mxu0 0
          %1513 = vmatpush.bf16.msra.mxu0 0
          %1514 = vmatpush.bf16.msra.mxu0 %v1492
          %1515 = vmatpush.bf16.msra.mxu0 %v1491
          %1516 = vmatpush.bf16.msra.mxu0 %v1490
          %1517 = vmatpush.bf16.msra.mxu0 %v1489
          %1518 = vmatmul.bf16.gmra.mxu0 %v1499
          %v1519 = vpop.f32.mrf.mxu0
          %v1520 = vadd.f32 %v1471, %v1519
          %v1521 = vpop.f32.mrf.mxu0
          %v1522 = vadd.f32 %v1471, %v1521
          %1523 = vmatmul.bf16.gmra.mxu0 %v1502
          %v1524 = vpop.f32.mrf.mxu0
          %v1525 = vadd.f32 %v1471, %v1524
          %v1526 = vpop.f32.mrf.mxu0
          %v1527 = vadd.f32 %v1471, %v1526
          %1528 = vmatmul.bf16.gmra.mxu0 %v1505
          %v1529 = vpop.f32.mrf.mxu0
          %v1530 = vadd.f32 %v1471, %v1529
          %v1531 = vpop.f32.mrf.mxu0
          %v1532 = vadd.f32 %v1471, %v1531
          %1533 = vmatmul.bf16.gmra.mxu0 %v1508
          %v1534 = vpop.f32.mrf.mxu0
          %v1535 = vadd.f32 %v1471, %v1534
          %v1536 = vpop.f32.mrf.mxu0
          %v1537 = vadd.f32 %v1471, %v1536
          %1538 = vdwg.mxu0
          %v1539 = vadd.f32 %v1520, %v1337
          %v1540 = vadd.f32 %v1522, %v1338
          %v1541 = vadd.f32 %v1525, %v1339
          %v1542 = vadd.f32 %v1527, %v1340
          %v1543 = vadd.f32 %v1530, %v1341
          %v1544 = vadd.f32 %v1532, %v1342
          %v1545 = vadd.f32 %v1535, %v1343
          %v1546 = vadd.f32 %v1537, %v1344
        $region85: #{transformer_forward.1} parent=59 // loop_footer
          %s463 = sadd.s32 1, %s459
        $region86: #{transformer_forward.1} parent=59 // loop_footer_branch
          %458 = sbr.rel target = $region82
        $region87: #{transformer_forward.1} parent=59 // loop_exit
          _
        %vm1547 = vcmask 261120
        %1548 = vst.msk [vmem:[%s446] sm:$0xff] %vm1547, %v464
        %1549 = vst.msk [vmem:[%s446 + $0x8] sm:$0xff] %vm1547, %v465
        %1550 = vst.msk [vmem:[%s446 + $0x10] sm:$0xff] %vm1547, %v466
        %1551 = vst.msk [vmem:[%s446 + $0x18] sm:$0xff] %vm1547, %v467
        %1552 = vst.msk [vmem:[%s446 + $0x20] sm:$0xff] %vm1547, %v468
        %1553 = vst.msk [vmem:[%s446 + $0x28] sm:$0xff] %vm1547, %v469
        %1554 = vst.msk [vmem:[%s446 + $0x30] sm:$0xff] %vm1547, %v470
        %1555 = vst.msk [vmem:[%s446 + $0x38] sm:$0xff] %vm1547, %v471
        %s1556 = sand.u32 %s252, 1
        %s1557 = scalar_lea.sflag [#allocation4], %s1556
        %s1558 = sand.u32 %s252, 1
        %s1559 = smul.addr %s1558, 64
        %s1560 = scalar_lea.vmem [#allocation11], %s1559
        // Predicated region
        $region88: #{transformer_forward.1} parent=59 // pred_check
          %p1561 = pneg %p262
        $region89: #{transformer_forward.1} parent=59 // pred_check_branch
          %1563 = sbr.rel (%p1561) target = $region91
        $region90: #{transformer_forward.1} parent=59 // pred_region
          %s1564 = smul.u32 4, %s29
          %1566 = vsyncadd %s1557, 0
          %s1567 = smul.addr %s1564, 2
          %s1568 = smul.addr %s1567, 8
          %s1569 = scalar_lea.hbm %s10, %s1568
          %s1570 = sshll.u32 %s1560, 4
          %s1571 = int_to_ptr.vmem [resolvable:$true] %s1570
          %s1572 = sshll.u32 %s1569, 4
          %s1573 = int_to_ptr.hbm [resolvable:$true] %s1572
          %1578 = dma.vmem_to_hbm [thread:$0]  %s1571, 1024, %s1573, %s1557, 128, 128, 8
        $region91: #{transformer_forward.1} parent=59 // pred_fallthru
          _
      $region60: #{transformer_forward.1} parent=5 // pred_fallthru
        _
      %p1579 = scmp.le.s32.totalorder 2, %s24
      // Predicated region
      $region92: #{transformer_forward.1} parent=5 // pred_check
        %p1580 = pneg %p1579
      $region93: #{transformer_forward.1} parent=5 // pred_check_branch
        %1582 = sbr.rel (%p1580) target = $region95
      $region94: #{transformer_forward.1} parent=5 // pred_region
        %s1583 = ssub.s32 %s24, 2
        // Predicated region
        $region96: #{transformer_forward.1} parent=94 // pred_check
          %p1584 = pneg %p268
        $region97: #{transformer_forward.1} parent=94 // pred_check_branch
          %1586 = sbr.rel (%p1584) target = $region99
        $region98: #{transformer_forward.1} parent=94 // pred_region
          %s1587 = sand.u32 %s253, 1
          %s1588 = scalar_lea.sflag [#allocation4], %s1587
          %s1589 = sand.u32 %s253, 1
          %s1590 = smul.addr %s1589, 64
          %s1591 = scalar_lea.vmem [#allocation11], %s1590
          %1593 = dma.done %s1588, 1024
        $region99: #{transformer_forward.1} parent=94 // pred_fallthru
          _
      $region95: #{transformer_forward.1} parent=5 // pred_fallthru
        _
    $region6: #{transformer_forward.1} parent=1 // loop_footer
      %s28 = sadd.s32 1, %s24
    $region7: #{transformer_forward.1} parent=1 // loop_footer_branch
      %23 = sbr.rel target = $region3
    $region8: #{transformer_forward.1} parent=1 // loop_exit
      _
    %1594 = vsyncpa [#allocation3], 1
    %s1595 = scalar_lea.sflag [#allocation3], 1
    %1596 = vsyncpa %s1595, 1
    %1597 = vsyncpa [#allocation6], 1
    %1598 = vsyncpa [#allocation9], 1
    %1599 = vsyncpa [#allocation4], 1
    %s1600 = scalar_lea.sflag [#allocation4], 1
    %1601 = vsyncpa %s1600, 1

</llo_original>
